<compile_context>
chip_gen: v7x
topology: tpu7x:2x2x1
jax: 0.10.0
libtpu: 0.0.40
codegen_flags: <defaults>
</compile_context>

<pallas_src>
import functools

import jax
import jax.numpy as jnp
from jax.experimental import pallas as pl
from jax.experimental.pallas import tpu as pltpu


# ---------------------------------------------------------------------------
# Chip-aware VMEM budgets
# ---------------------------------------------------------------------------
def _vmem_config():
    cap = 64 * 1024 * 1024
    try:
        cap = int(pltpu.get_tpu_info().vmem_capacity_bytes)
    except Exception:  # fall back to a conservative (v7x-safe) default
        pass
    limit = max(32 * 1024 * 1024, min(cap * 3 // 4, 96 * 1024 * 1024))
    budget = max(8 * 1024 * 1024, limit * 45 // 100)
    return limit, budget


_VMEM_LIMIT_BYTES, _VMEM_TILE_BUDGET = _vmem_config()


def _round_up(x, m):
    return ((x + m - 1) // m) * m


def _pad_axis(a, size, axis):
    if a.shape[axis] == size:
        return a
    widths = [(0, 0)] * a.ndim
    widths[axis] = (0, size - a.shape[axis])
    return jnp.pad(a, widths)


# ---------------------------------------------------------------------------
# Stride-1 conv kernel with in-kernel im2col (conv + folded-BN bias [+ shortcut] + ReLU)
# ---------------------------------------------------------------------------
def _make_conv_kernel(mode, k):
    """mode: "plain" -> relu(conv(x) + b)
             "proj"  -> relu(conv(x) + b + s @ wsc)   (1x1-conv projection shortcut)
             "res"   -> relu(conv(x) + b + r)         (identity shortcut)
    """
    def kernel(*refs):
        if mode == "proj":
            x_ref, w_ref, b_ref, s_ref, wsc_ref, o_ref = refs
        elif mode == "res":
            x_ref, w_ref, b_ref, r_ref, o_ref = refs
        else:
            x_ref, w_ref, b_ref, o_ref = refs

        _, th, wo, cout_p = o_ref.shape
        cin = w_ref.shape[1]
        row0 = pl.program_id(1) * th           # first output row of this block

        acc = jnp.zeros((th * wo, cout_p), jnp.float32)
        # In-kernel im2col: k*k shifted windows of the resident padded image,
        # each contracted against its (cin, cout_p) weight slab on the MXU.
        for kh in range(k):
            for kw in range(k):
                xwin = x_ref[0, pl.ds(row0 + kh, th), pl.ds(kw, wo), :]
                acc += jnp.dot(xwin.reshape(th * wo, cin), w_ref[kh * k + kw],
                               preferred_element_type=jnp.float32)
        acc += b_ref[...]
        if mode == "proj":
            s = s_ref[0].reshape(th * wo, s_ref.shape[-1])
            acc += jnp.dot(s, wsc_ref[...], preferred_element_type=jnp.float32)
        elif mode == "res":
            acc += r_ref[0].reshape(th * wo, cout_p).astype(jnp.float32)
        out = jnp.maximum(acc, 0.0)
        o_ref[...] = out.reshape(1, th, wo, cout_p).astype(o_ref.dtype)

    return kernel


def _choose_th(ho, fixed_bytes, per_row_bytes):
    """Largest divisor of ho whose (double-buffered) footprint fits the VMEM budget."""
    th = 1
    for cand in range(1, ho + 1):
        if ho % cand == 0 and fixed_bytes + cand * per_row_bytes <= _VMEM_TILE_BUDGET:
            th = cand
    return th


def _conv_s1(x_pad, w, b, *, k, ho, wo, shortcut=None, residual=None,
             out_dtype=jnp.bfloat16):
    """Stride-1 KxK conv + folded-BN bias + (optional shortcut) + ReLU.

    x_pad:    (N, ho+k-1, wo+k-1, Cin)  spatially pre-padded NHWC, bf16
    w:        (k*k, Cin, Cout_p)        BN-scale folded weights, bf16
    b:        (1, Cout_p)               folded bias, f32
    shortcut: (xs, wsc) with xs (N, ho, wo, Csc) bf16 and wsc (Csc, Cout_p) bf16
    residual: (N, ho, wo, Cout_p) bf16, added before the final ReLU
    """
    n, hp, wp, cx = x_pad.shape
    kk, cin_w, cout_p = w.shape
    assert cin_w == cx and kk == k * k
    out_isz = jnp.dtype(out_dtype).itemsize

    if shortcut is not None:
        mode, extra_c = "proj", shortcut[0].shape[-1]
    elif residual is not None:
        mode, extra_c = "res", cout_p
    else:
        mode, extra_c = "plain", 0

    # VMEM accounting: every input BlockSpec is double-buffered by default.
    fixed = (2 * hp * wp * cx * 2            # resident padded image (bf16)
             + 2 * kk * cin_w * cout_p * 2   # weights (bf16)
             + 2 * cout_p * 4)               # bias (f32)
    per_row = 2 * wo * (cout_p * out_isz + extra_c * 2)   # out + side-input blocks
    per_row += 4 * wo * cout_p * 4                        # f32 accumulator + temporaries
    th = _choose_th(ho, fixed, per_row)
    rb = ho // th

    in_specs = [
        pl.BlockSpec((1, hp, wp, cx), lambda i, r: (i, 0, 0, 0)),     # image (resident per n)
        pl.BlockSpec((kk, cin_w, cout_p), lambda i, r: (0, 0, 0)),    # weights
        pl.BlockSpec((1, cout_p), lambda i, r: (0, 0)),               # bias
    ]
    args = [x_pad, w, b]
    flops = 2 * n * ho * wo * cout_p * kk * cin_w
    if shortcut is not None:
        xs, wsc = shortcut
        in_specs += [
            pl.BlockSpec((1, th, wo, xs.shape[-1]), lambda i, r: (i, r, 0, 0)),
            pl.BlockSpec(wsc.shape, lambda i, r: (0, 0)),
        ]
        args += [xs, wsc]
        flops += 2 * n * ho * wo * cout_p * xs.shape[-1]
    elif residual is not None:
        in_specs.append(pl.BlockSpec((1, th, wo, cout_p), lambda i, r: (i, r, 0, 0)))
        args.append(residual)

    bytes_accessed = int(sum(int(a.size) * a.dtype.itemsize for a in args)
                         + n * ho * wo * cout_p * out_isz)
    cost = pl.CostEstimate(flops=int(flops), transcendentals=0,
                           bytes_accessed=bytes_accessed)

    return pl.pallas_call(
        _make_conv_kernel(mode, k),
        grid=(n, rb),
        in_specs=in_specs,
        out_specs=pl.BlockSpec((1, th, wo, cout_p), lambda i, r: (i, r, 0, 0)),
        out_shape=jax.ShapeDtypeStruct((n, ho, wo, cout_p), out_dtype),
        compiler_params=pltpu.CompilerParams(
            dimension_semantics=("parallel", "arbitrary"),
            vmem_limit_bytes=_VMEM_LIMIT_BYTES),
        cost_estimate=cost,
    )(*args)


# ---------------------------------------------------------------------------
# Patches-GEMM path (only for the strided first conv); lane-dense, K pre-padded
# ---------------------------------------------------------------------------
def matmul_bias_relu_kernel(p_ref, w_ref, b_ref, o_ref):
    acc = jnp.dot(p_ref[...], w_ref[...], preferred_element_type=jnp.float32)
    o_ref[...] = jnp.maximum(acc + b_ref[...], 0.0).astype(o_ref.dtype)


def _choose_tm(m, k_dim, tn, in_isz, out_isz):
    # weights + bias counted double-buffered (Pallas double-buffers every input spec)
    w_bytes = 2 * (k_dim * tn * 2 + tn * 4)
    row_bytes = 2 * (k_dim * in_isz + tn * out_isz) + tn * 4
    tm = 128
    for cand in (1024, 512, 256, 128):
        if w_bytes + cand * row_bytes <= _VMEM_TILE_BUDGET:
            tm = cand
            break
    return min(tm, _round_up(m, 128))


def _matmul_bias_relu(patches, weights, bias, out_dtype=jnp.bfloat16):
    """out[i, :] = relu(patches[i, :] @ weights + bias)."""
    m, k_dim = patches.shape
    n_tot = weights.shape[1]
    # Second grid axis over cout keeps resident weights small (v7x VMEM) while
    # keeping 128-lane-dense stores.
    tn = n_tot if (n_tot <= 256 or n_tot % 256 != 0) else 256
    out_isz = jnp.dtype(out_dtype).itemsize
    tm = _choose_tm(m, k_dim, tn, patches.dtype.itemsize, out_isz)
    m_pad = _round_up(m, tm)
    patches = _pad_axis(patches, m_pad, 0)

    bytes_accessed = int(patches.size * patches.dtype.itemsize
                         + weights.size * weights.dtype.itemsize
                         + bias.size * bias.dtype.itemsize
                         + m_pad * n_tot * out_isz)
    cost = pl.CostEstimate(flops=2 * m_pad * k_dim * n_tot, transcendentals=0,
                           bytes_accessed=bytes_accessed)

    out = pl.pallas_call(
        matmul_bias_relu_kernel,
        grid=(m_pad // tm, n_tot // tn),
        in_specs=[pl.BlockSpec((tm, k_dim), lambda i, j: (i, 0)),
                  pl.BlockSpec((k_dim, tn), lambda i, j: (0, j)),
                  pl.BlockSpec((1, tn), lambda i, j: (0, j))],
        out_specs=pl.BlockSpec((tm, tn), lambda i, j: (i, j)),
        out_shape=jax.ShapeDtypeStruct((m_pad, n_tot), out_dtype),
        compiler_params=pltpu.CompilerParams(
            dimension_semantics=("parallel", "parallel"),
            vmem_limit_bytes=_VMEM_LIMIT_BYTES),
        cost_estimate=cost,
    )(patches, weights, bias)
    return out[:m]


def im2col(x_nhwc, k, stride, pad, k_total=None):
    """Patch matrix for the strided-conv GEMM path.  K is zero-padded to `k_total`
    inside the single concat (lane-aligned loads for free)."""
    x_p = jnp.pad(x_nhwc, ((0, 0), (pad, pad), (pad, pad), (0, 0)))
    n, hp, wp, c = x_p.shape
    ho = (hp - k) // stride + 1
    wo = (wp - k) // stride + 1
    cols = []
    for kh in range(k):
        for kw in range(k):
            cols.append(x_p[:, kh:kh + stride * ho:stride,
                            kw:kw + stride * wo:stride, :])
    kk = k * k * c
    if k_total is not None and k_total > kk:
        cols.append(jnp.zeros((n, ho, wo, k_total - kk), x_nhwc.dtype))
    patches = jnp.concatenate(cols, axis=-1)
    return patches.reshape(n * ho * wo, patches.shape[-1]), ho, wo


# ---------------------------------------------------------------------------
# BN folding and parameter preparation (done once, outside the traced forward)
# ---------------------------------------------------------------------------
def fold_bn(gamma, beta, mean, var, eps=1e-5):
    scale = gamma / jnp.sqrt(var + eps)
    bias = beta - mean * scale
    return scale.astype(jnp.float32), bias.astype(jnp.float32)


def prepare_block_params(params, *, stride, kernel_size, cin, eps=1e-5):
    k = kernel_size
    cout = params["w1"].shape[-1]
    cout_p = _round_up(cout, 128)
    cpad = cout_p - cout
    projection = (stride != 1) or (cin != cout)

    s1, b1 = fold_bn(params["g1"], params["be1"], params["m1"], params["v1"], eps)
    s2, b2 = fold_bn(params["g2"], params["be2"], params["m2"], params["v2"], eps)

    # HWIO (k,k,cin,cout) -> (k*k, cin, cout_p); BN scale folded into the columns.
    w1 = params["w1"].reshape(k * k, cin, cout) * s1[None, None, :]
    w1 = jnp.pad(w1, ((0, 0), (0, 0), (0, cpad)))
    # conv2 consumes lane-padded h1: zero rows for the padded input channels.
    w2 = params["w2"].reshape(k * k, cout, cout) * s2[None, None, :]
    w2 = jnp.pad(w2, ((0, 0), (0, cpad), (0, cpad)))

    prep = dict(
        b1=jnp.pad(b1, (0, cpad))[None, :].astype(jnp.float32),
        w2=w2.astype(jnp.bfloat16),
    )
    if stride == 1:
        prep["w1"] = w1.astype(jnp.bfloat16)
    else:
        # strided conv1 runs as a patches GEMM: flatten and pad K to a 128 multiple.
        k1 = k * k * cin
        w1g = _pad_axis(w1.reshape(k1, cout_p), _round_up(k1, 128), 0)
        prep["w1g"] = w1g.astype(jnp.bfloat16)

    if projection:
        ssc, bsc = fold_bn(params["gsc"], params["besc"],
                           params["msc"], params["vsc"], eps)
        wsc = params["wsc"].reshape(cin, cout) * ssc[None, :]
        prep["wsc"] = jnp.pad(wsc, ((0, 0), (0, cpad))).astype(jnp.bfloat16)
        b2 = b2 + bsc
    prep["b2"] = jnp.pad(b2, (0, cpad))[None, :].astype(jnp.float32)

    meta = dict(stride=stride, kernel_size=kernel_size, cout=cout,
                cout_p=cout_p, projection=projection)
    return prep, meta


def init_params(key, cin, cout, k):
    ks = jax.random.split(key, 15)

    def bn_params(k1, k2, k3, k4, c):
        g = 1.0 + 0.1 * jax.random.normal(k1, (c,), jnp.float32)
        be = 0.1 * jax.random.normal(k2, (c,), jnp.float32)
        m = 0.1 * jax.random.normal(k3, (c,), jnp.float32)
        v = 0.5 + 0.5 * jnp.abs(jax.random.normal(k4, (c,), jnp.float32))
        return g, be, m, v

    w1 = 0.2 * jax.random.normal(ks[0], (k, k, cin, cout), jnp.float32)
    w2 = 0.2 * jax.random.normal(ks[1], (k, k, cout, cout), jnp.float32)
    wsc = 0.2 * jax.random.normal(ks[2], (1, 1, cin, cout), jnp.float32)
    g1, be1, m1, v1 = bn_params(ks[3], ks[4], ks[5], ks[6], cout)
    g2, be2, m2, v2 = bn_params(ks[7], ks[8], ks[9], ks[10], cout)
    gs, bes, ms, vs = bn_params(ks[11], ks[12], ks[13], ks[14], cout)
    return dict(w1=w1, w2=w2, wsc=wsc,
                g1=g1, be1=be1, m1=m1, v1=v1,
                g2=g2, be2=be2, m2=m2, v2=v2,
                gsc=gs, besc=bes, msc=ms, vsc=vs)


# ---------------------------------------------------------------------------
# Forward pass (Pallas) and pure-JAX reference
# ---------------------------------------------------------------------------
@functools.partial(jax.jit, static_argnames=("stride", "kernel_size", "cout",
                                              "cout_p", "projection"))
def _forward_impl(x_nchw, prep, *, stride, kernel_size, cout, cout_p, projection):
    k = kernel_size
    pad = (k - 1) // 2
    n, cin, h, w_sz = x_nchw.shape
    ho = (h + 2 * pad - k) // stride + 1
    wo = (w_sz + 2 * pad - k) // stride + 1

    x_bf = jnp.transpose(x_nchw, (0, 2, 3, 1)).astype(jnp.bfloat16)   # NHWC bf16

    # ---- conv1 + BN1 + ReLU (bf16 write-back) --------------------------------
    if stride == 1:
        x_pad = jnp.pad(x_bf, ((0, 0), (pad, pad), (pad, pad), (0, 0)))
        h1 = _conv_s1(x_pad, prep["w1"], prep["b1"], k=k, ho=ho, wo=wo)
    else:
        # TODO(synk): strided conv still uses a wrapper-side im2col GEMM
        # (amplification only k*k/stride^2 here); in-kernel strided windows would
        # remove it entirely.
        k1p = _round_up(k * k * cin, 128)
        p1, _, _ = im2col(x_bf, k, stride, pad, k_total=k1p)
        h1 = _matmul_bias_relu(p1, prep["w1g"], prep["b1"], out_dtype=jnp.bfloat16)
        h1 = h1.reshape(n, ho, wo, cout_p)

    # ---- conv2 + BN2 (+ shortcut) + residual add + ReLU ----------------------
    h1_pad = jnp.pad(h1, ((0, 0), (pad, pad), (pad, pad), (0, 0)))
    if projection:
        xs = x_bf[:, ::stride, ::stride, :]                 # 1x1-conv shortcut input
        out = _conv_s1(h1_pad, prep["w2"], prep["b2"], k=k, ho=ho, wo=wo,
                       shortcut=(xs, prep["wsc"]))
    else:
        # identity shortcut: lane-padded bf16 residual, plain VPU add in-kernel
        res = _pad_axis(x_bf, cout_p, 3)
        out = _conv_s1(h1_pad, prep["w2"], prep["b2"], k=k, ho=ho, wo=wo,
                       residual=res)

    out = out[..., :cout].astype(jnp.float32)
    return jnp.transpose(out, (0, 3, 1, 2))                 # back to NCHW, f32


def residual_block_forward(x_nchw, prep, meta):
    return _forward_impl(x_nchw, prep, **meta)


def reference_forward(x_nchw, params, *, stride, kernel_size, quantized=False):
    """Pure-JAX reference.  quantized=True mirrors the kernel's bf16 quantization
    points (folded weights, input, h1) so a tight tolerance is meaningful."""
    x = jnp.transpose(x_nchw, (0, 2, 3, 1)).astype(jnp.float32)
    cin = x.shape[-1]
    cout = params["w1"].shape[-1]
    k = kernel_size
    pad = (k - 1) // 2
    q = ((lambda a: a.astype(jnp.bfloat16).astype(jnp.float32)) if quantized
         else (lambda a: a))

    def conv(inp, w_hwio, s, p):
        return jax.lax.conv_general_dilated(
            inp, w_hwio, window_strides=(s, s), padding=[(p, p), (p, p)],
            dimension_numbers=("NHWC", "HWIO", "NHWC"))

    def folded(inp, w_hwio, g, be, mu, var, s, p):
        sc, bi = fold_bn(g, be, mu, var)
        return conv(inp, q(w_hwio * sc[None, None, None, :]), s, p) + bi

    xq = q(x)
    h = jax.nn.relu(folded(xq, params["w1"], params["g1"], params["be1"],
                           params["m1"], params["v1"], stride, pad))
    h = q(h)
    y = folded(h, params["w2"], params["g2"], params["be2"],
               params["m2"], params["v2"], 1, pad)
    if stride != 1 or cin != cout:
        y = y + folded(xq, params["wsc"], params["gsc"], params["besc"],
                       params["msc"], params["vsc"], stride, 0)
    else:
        y = y + xq
    out = jax.nn.relu(y)
    return jnp.transpose(out, (0, 3, 1, 2))


# ---------------------------------------------------------------------------
if __name__ == "__main__":
    key = jax.random.PRNGKey(0)

    configs = [
        # projection shortcut, strided conv1 (GEMM path) + fused-shortcut conv kernel
        dict(N=2, Cin=4, H=16, W=16, Cout=8, stride=2, k=3),
        # identity shortcut: in-kernel conv1 + residual-add conv kernel
        dict(N=2, Cin=8, H=8, W=8, Cout=8, stride=1, k=3),
        # projection at stride 1: in-kernel conv1 + fused-shortcut conv kernel
        dict(N=2, Cin=4, H=16, W=16, Cout=8, stride=1, k=3),
    ]

    for idx, cfg in enumerate(configs):
        kx, kp, key = jax.random.split(key, 3)
        x = jax.random.normal(kx, (cfg["N"], cfg["Cin"], cfg["H"], cfg["W"]),
                              jnp.float32)
        params = init_params(kp, cfg["Cin"], cfg["Cout"], cfg["k"])
        prep, meta = prepare_block_params(params, stride=cfg["stride"],
                                          kernel_size=cfg["k"], cin=cfg["Cin"])

        out = jax.block_until_ready(residual_block_forward(x, prep, meta))

        pad = (cfg["k"] - 1) // 2
        ho = (cfg["H"] + 2 * pad - cfg["k"]) // cfg["stride"] + 1
        wo = (cfg["W"] + 2 * pad - cfg["k"]) // cfg["stride"] + 1
        assert out.shape == (cfg["N"], cfg["Cout"], ho, wo), out.shape

        # Tight check vs. a reference that mirrors the bf16 quantization points.
        ref_q = reference_forward(x, params, stride=cfg["stride"],
                                  kernel_size=cfg["k"], quantized=True)
        if not jnp.allclose(out, ref_q, atol=2e-2, rtol=2e-2):
            err = float(jnp.max(jnp.abs(out - ref_q)))
            raise SystemExit(
                f"config {idx}: mismatch vs quantized reference, max abs err = {err:e}")

        # Looser sanity check vs. the plain f32 reference of the original module.
        ref_f = reference_forward(x, params, stride=cfg["stride"],
                                  kernel_size=cfg["k"], quantized=False)
        if not jnp.allclose(out, ref_f, atol=5e-2, rtol=5e-2):
            err = float(jnp.max(jnp.abs(out - ref_f)))
            raise SystemExit(
                f"config {idx}: mismatch vs f32 reference, max abs err = {err:e}")

    print("KERNEL_OK")
</pallas_src>

<mosaic_0001>
module attributes {stable_mosaic.version = 11 : i64} {
  func.func @matmul_bias_relu_kernel(%arg0: i32, %arg1: i32, %arg2: memref<128x128xbf16, #tpu.memory_space<vmem>>, %arg3: memref<128x128xbf16, #tpu.memory_space<vmem>>, %arg4: memref<1x128xf32, #tpu.memory_space<vmem>>, %arg5: memref<128x128xbf16, #tpu.memory_space<vmem>>) attributes {dimension_semantics = [#tpu.dimension_semantics<parallel>, #tpu.dimension_semantics<parallel>], iteration_bounds = array<i64: 1, 1>, scalar_prefetch = 0 : i64, scratch_operands = 0 : i64, tpu.core_type = #tpu.core_type<tc>, window_params = [{transform_indices = @transform_0, window_bounds = array<i64: 128, 128>}, {transform_indices = @transform_1, window_bounds = array<i64: 128, 128>}, {transform_indices = @transform_2, window_bounds = array<i64: 1, 128>}, {transform_indices = @transform_3, window_bounds = array<i64: 128, 128>}]} {
    %c0 = arith.constant 0 : index
    %c0_0 = arith.constant 0 : index
    %0 = vector.load %arg2[%c0, %c0_0] : memref<128x128xbf16, #tpu.memory_space<vmem>>, vector<128x128xbf16>
    %c0_1 = arith.constant 0 : index
    %c0_2 = arith.constant 0 : index
    %1 = vector.load %arg3[%c0_1, %c0_2] : memref<128x128xbf16, #tpu.memory_space<vmem>>, vector<128x128xbf16>
    %cst = arith.constant dense<0.000000e+00> : vector<128x128xf32>
    %2 = tpu.matmul %0, %1, %cst {dimension_numbers = #tpu.dot_dimension_numbers<[1], [0], [0], [1], [0, 0, 1, 1], [], []>} : vector<128x128xbf16>, vector<128x128xbf16>, vector<128x128xf32> -> vector<128x128xf32>
    %c0_3 = arith.constant 0 : index
    %c0_4 = arith.constant 0 : index
    %3 = vector.load %arg4[%c0_3, %c0_4] : memref<1x128xf32, #tpu.memory_space<vmem>>, vector<1x128xf32>
    %4 = vector.broadcast %3 : vector<1x128xf32> to vector<128x128xf32>
    %5 = arith.addf %2, %4 : vector<128x128xf32>
    %cst_5 = arith.constant 0.000000e+00 : f32
    %6 = vector.broadcast %cst_5 : f32 to vector<128x128xf32>
    %7 = arith.maximumf %5, %6 : vector<128x128xf32>
    %8 = arith.truncf %7 : vector<128x128xf32> to vector<128x128xbf16>
    %c0_6 = arith.constant 0 : index
    %c0_7 = arith.constant 0 : index
    %9 = vector.load %arg5[%c0_6, %c0_7] : memref<128x128xbf16, #tpu.memory_space<vmem>>, vector<128x128xbf16>
    tpu.vector_store %arg5[%c0_6, %c0_7], %8 {strides = array<i32>} : memref<128x128xbf16, #tpu.memory_space<vmem>>, vector<128x128xbf16>,
    return
  }
  func.func @transform_0(%arg0: i32, %arg1: i32) -> (i32, i32) {
    %c0_i32 = arith.constant 0 : i32
    %c0_i32_0 = arith.constant 0 : i32
    return %arg0, %c0_i32 : i32, i32
  }
  func.func @transform_1(%arg0: i32, %arg1: i32) -> (i32, i32) {
    %c0_i32 = arith.constant 0 : i32
    %c0_i32_0 = arith.constant 0 : i32
    return %c0_i32, %arg1 : i32, i32
  }
  func.func @transform_2(%arg0: i32, %arg1: i32) -> (i32, i32) {
    %c0_i32 = arith.constant 0 : i32
    %c0_i32_0 = arith.constant 0 : i32
    return %c0_i32, %arg1 : i32, i32
  }
  func.func @transform_3(%arg0: i32, %arg1: i32) -> (i32, i32) {
    %c0_i32 = arith.constant 0 : i32
    return %arg0, %arg1 : i32, i32
  }
}

module attributes {stable_mosaic.version = 11 : i64} {
  func.func @kernel(%arg0: i32, %arg1: i32, %arg2: memref<1x10x10x128xbf16, #tpu.memory_space<vmem>>, %arg3: memref<9x128x128xbf16, #tpu.memory_space<vmem>>, %arg4: memref<1x128xf32, #tpu.memory_space<vmem>>, %arg5: memref<1x8x8x4xbf16, #tpu.memory_space<vmem>>, %arg6: memref<4x128xbf16, #tpu.memory_space<vmem>>, %arg7: memref<1x8x8x128xbf16, #tpu.memory_space<vmem>>) attributes {dimension_semantics = [#tpu.dimension_semantics<parallel>, #tpu.dimension_semantics<arbitrary>], iteration_bounds = array<i64: 2, 1>, scalar_prefetch = 0 : i64, scratch_operands = 0 : i64, tpu.core_type = #tpu.core_type<tc>, window_params = [{transform_indices = @transform_0, window_bounds = array<i64: 1, 10, 10, 128>}, {pipeline_mode = #tpu.pipeline_mode<synchronous>, transform_indices = @transform_1, window_bounds = array<i64: 9, 128, 128>}, {pipeline_mode = #tpu.pipeline_mode<synchronous>, transform_indices = @transform_2, window_bounds = array<i64: 1, 128>}, {transform_indices = @transform_3, window_bounds = array<i64: 1, 8, 8, 4>}, {pipeline_mode = #tpu.pipeline_mode<synchronous>, transform_indices = @transform_4, window_bounds = array<i64: 4, 128>}, {transform_indices = @transform_5, window_bounds = array<i64: 1, 8, 8, 128>}]} {
    %c8_i32 = arith.constant 8 : i32
    %0 = arith.muli %arg1, %c8_i32 : i32
    %cst = arith.constant 0.000000e+00 : f32
    %1 = vector.broadcast %cst : f32 to vector<64x128xf32>
    %c0_i32 = arith.constant 0 : i32
    %2 = arith.addi %0, %c0_i32 : i32
    %c0 = arith.constant 0 : index
    %3 = arith.index_cast %2 : i32 to index
    %c0_0 = arith.constant 0 : index
    %c0_1 = arith.constant 0 : index
    %4 = vector.load %arg2[%c0, %3, %c0_0, %c0_1] : memref<1x10x10x128xbf16, #tpu.memory_space<vmem>>, vector<1x8x8x128xbf16>
    %5 = vector.shape_cast %4 : vector<1x8x8x128xbf16> to vector<8x8x128xbf16>
    %6 = vector.shape_cast %5 : vector<8x8x128xbf16> to vector<64x128xbf16>
    %c0_2 = arith.constant 0 : index
    %c0_3 = arith.constant 0 : index
    %c0_4 = arith.constant 0 : index
    %7 = vector.load %arg3[%c0_2, %c0_3, %c0_4] : memref<9x128x128xbf16, #tpu.memory_space<vmem>>, vector<1x128x128xbf16>
    %8 = vector.shape_cast %7 : vector<1x128x128xbf16> to vector<128x128xbf16>
    %cst_5 = arith.constant dense<0.000000e+00> : vector<64x128xf32>
    %9 = tpu.matmul %6, %8, %cst_5 {dimension_numbers = #tpu.dot_dimension_numbers<[1], [0], [0], [1], [0, 0, 1, 1], [], []>} : vector<64x128xbf16>, vector<128x128xbf16>, vector<64x128xf32> -> vector<64x128xf32>
    %10 = arith.addf %1, %9 : vector<64x128xf32>
    %c0_i32_6 = arith.constant 0 : i32
    %11 = arith.addi %0, %c0_i32_6 : i32
    %c0_7 = arith.constant 0 : index
    %12 = arith.index_cast %11 : i32 to index
    %c1 = arith.constant 1 : index
    %c0_8 = arith.constant 0 : index
    %13 = vector.load %arg2[%c0_7, %12, %c1, %c0_8] : memref<1x10x10x128xbf16, #tpu.memory_space<vmem>>, vector<1x8x8x128xbf16>
    %14 = vector.shape_cast %13 : vector<1x8x8x128xbf16> to vector<8x8x128xbf16>
    %15 = vector.shape_cast %14 : vector<8x8x128xbf16> to vector<64x128xbf16>
    %c1_9 = arith.constant 1 : index
    %c0_10 = arith.constant 0 : index
    %c0_11 = arith.constant 0 : index
    %16 = vector.load %arg3[%c1_9, %c0_10, %c0_11] : memref<9x128x128xbf16, #tpu.memory_space<vmem>>, vector<1x128x128xbf16>
    %17 = vector.shape_cast %16 : vector<1x128x128xbf16> to vector<128x128xbf16>
    %cst_12 = arith.constant dense<0.000000e+00> : vector<64x128xf32>
    %18 = tpu.matmul %15, %17, %cst_12 {dimension_numbers = #tpu.dot_dimension_numbers<[1], [0], [0], [1], [0, 0, 1, 1], [], []>} : vector<64x128xbf16>, vector<128x128xbf16>, vector<64x128xf32> -> vector<64x128xf32>
    %19 = arith.addf %10, %18 : vector<64x128xf32>
    %c0_i32_13 = arith.constant 0 : i32
    %20 = arith.addi %0, %c0_i32_13 : i32
    %c0_14 = arith.constant 0 : index
    %21 = arith.index_cast %20 : i32 to index
    %c2 = arith.constant 2 : index
    %c0_15 = arith.constant 0 : index
    %22 = vector.load %arg2[%c0_14, %21, %c2, %c0_15] : memref<1x10x10x128xbf16, #tpu.memory_space<vmem>>, vector<1x8x8x128xbf16>
    %23 = vector.shape_cast %22 : vector<1x8x8x128xbf16> to vector<8x8x128xbf16>
    %24 = vector.shape_cast %23 : vector<8x8x128xbf16> to vector<64x128xbf16>
    %c2_16 = arith.constant 2 : index
    %c0_17 = arith.constant 0 : index
    %c0_18 = arith.constant 0 : index
    %25 = vector.load %arg3[%c2_16, %c0_17, %c0_18] : memref<9x128x128xbf16, #tpu.memory_space<vmem>>, vector<1x128x128xbf16>
    %26 = vector.shape_cast %25 : vector<1x128x128xbf16> to vector<128x128xbf16>
    %cst_19 = arith.constant dense<0.000000e+00> : vector<64x128xf32>
    %27 = tpu.matmul %24, %26, %cst_19 {dimension_numbers = #tpu.dot_dimension_numbers<[1], [0], [0], [1], [0, 0, 1, 1], [], []>} : vector<64x128xbf16>, vector<128x128xbf16>, vector<64x128xf32> -> vector<64x128xf32>
    %28 = arith.addf %19, %27 : vector<64x128xf32>
    %c1_i32 = arith.constant 1 : i32
    %29 = arith.addi %0, %c1_i32 : i32
    %c0_20 = arith.constant 0 : index
    %30 = arith.index_cast %29 : i32 to index
    %c0_21 = arith.constant 0 : index
    %c0_22 = arith.constant 0 : index
    %31 = vector.load %arg2[%c0_20, %30, %c0_21, %c0_22] : memref<1x10x10x128xbf16, #tpu.memory_space<vmem>>, vector<1x8x8x128xbf16>
    %32 = vector.shape_cast %31 : vector<1x8x8x128xbf16> to vector<8x8x128xbf16>
    %33 = vector.shape_cast %32 : vector<8x8x128xbf16> to vector<64x128xbf16>
    %c3 = arith.constant 3 : index
    %c0_23 = arith.constant 0 : index
    %c0_24 = arith.constant 0 : index
    %34 = vector.load %arg3[%c3, %c0_23, %c0_24] : memref<9x128x128xbf16, #tpu.memory_space<vmem>>, vector<1x128x128xbf16>
    %35 = vector.shape_cast %34 : vector<1x128x128xbf16> to vector<128x128xbf16>
    %cst_25 = arith.constant dense<0.000000e+00> : vector<64x128xf32>
    %36 = tpu.matmul %33, %35, %cst_25 {dimension_numbers = #tpu.dot_dimension_numbers<[1], [0], [0], [1], [0, 0, 1, 1], [], []>} : vector<64x128xbf16>, vector<128x128xbf16>, vector<64x128xf32> -> vector<64x128xf32>
    %37 = arith.addf %28, %36 : vector<64x128xf32>
    %c1_i32_26 = arith.constant 1 : i32
    %38 = arith.addi %0, %c1_i32_26 : i32
    %c0_27 = arith.constant 0 : index
    %39 = arith.index_cast %38 : i32 to index
    %c1_28 = arith.constant 1 : index
    %c0_29 = arith.constant 0 : index
    %40 = vector.load %arg2[%c0_27, %39, %c1_28, %c0_29] : memref<1x10x10x128xbf16, #tpu.memory_space<vmem>>, vector<1x8x8x128xbf16>
    %41 = vector.shape_cast %40 : vector<1x8x8x128xbf16> to vector<8x8x128xbf16>
    %42 = vector.shape_cast %41 : vector<8x8x128xbf16> to vector<64x128xbf16>
    %c4 = arith.constant 4 : index
    %c0_30 = arith.constant 0 : index
    %c0_31 = arith.constant 0 : index
    %43 = vector.load %arg3[%c4, %c0_30, %c0_31] : memref<9x128x128xbf16, #tpu.memory_space<vmem>>, vector<1x128x128xbf16>
    %44 = vector.shape_cast %43 : vector<1x128x128xbf16> to vector<128x128xbf16>
    %cst_32 = arith.constant dense<0.000000e+00> : vector<64x128xf32>
    %45 = tpu.matmul %42, %44, %cst_32 {dimension_numbers = #tpu.dot_dimension_numbers<[1], [0], [0], [1], [0, 0, 1, 1], [], []>} : vector<64x128xbf16>, vector<128x128xbf16>, vector<64x128xf32> -> vector<64x128xf32>
    %46 = arith.addf %37, %45 : vector<64x128xf32>
    %c1_i32_33 = arith.constant 1 : i32
    %47 = arith.addi %0, %c1_i32_33 : i32
    %c0_34 = arith.constant 0 : index
    %48 = arith.index_cast %47 : i32 to index
    %c2_35 = arith.constant 2 : index
    %c0_36 = arith.constant 0 : index
    %49 = vector.load %arg2[%c0_34, %48, %c2_35, %c0_36] : memref<1x10x10x128xbf16, #tpu.memory_space<vmem>>, vector<1x8x8x128xbf16>
    %50 = vector.shape_cast %49 : vector<1x8x8x128xbf16> to vector<8x8x128xbf16>
    %51 = vector.shape_cast %50 : vector<8x8x128xbf16> to vector<64x128xbf16>
    %c5 = arith.constant 5 : index
    %c0_37 = arith.constant 0 : index
    %c0_38 = arith.constant 0 : index
    %52 = vector.load %arg3[%c5, %c0_37, %c0_38] : memref<9x128x128xbf16, #tpu.memory_space<vmem>>, vector<1x128x128xbf16>
    %53 = vector.shape_cast %52 : vector<1x128x128xbf16> to vector<128x128xbf16>
    %cst_39 = arith.constant dense<0.000000e+00> : vector<64x128xf32>
    %54 = tpu.matmul %51, %53, %cst_39 {dimension_numbers = #tpu.dot_dimension_numbers<[1], [0], [0], [1], [0, 0, 1, 1], [], []>} : vector<64x128xbf16>, vector<128x128xbf16>, vector<64x128xf32> -> vector<64x128xf32>
    %55 = arith.addf %46, %54 : vector<64x128xf32>
    %c2_i32 = arith.constant 2 : i32
    %56 = arith.addi %0, %c2_i32 : i32
    %c0_40 = arith.constant 0 : index
    %57 = arith.index_cast %56 : i32 to index
    %c0_41 = arith.constant 0 : index
    %c0_42 = arith.constant 0 : index
    %58 = vector.load %arg2[%c0_40, %57, %c0_41, %c0_42] : memref<1x10x10x128xbf16, #tpu.memory_space<vmem>>, vector<1x8x8x128xbf16>
    %59 = vector.shape_cast %58 : vector<1x8x8x128xbf16> to vector<8x8x128xbf16>
    %60 = vector.shape_cast %59 : vector<8x8x128xbf16> to vector<64x128xbf16>
    %c6 = arith.constant 6 : index
    %c0_43 = arith.constant 0 : index
    %c0_44 = arith.constant 0 : index
    %61 = vector.load %arg3[%c6, %c0_43, %c0_44] : memref<9x128x128xbf16, #tpu.memory_space<vmem>>, vector<1x128x128xbf16>
    %62 = vector.shape_cast %61 : vector<1x128x128xbf16> to vector<128x128xbf16>
    %cst_45 = arith.constant dense<0.000000e+00> : vector<64x128xf32>
    %63 = tpu.matmul %60, %62, %cst_45 {dimension_numbers = #tpu.dot_dimension_numbers<[1], [0], [0], [1], [0, 0, 1, 1], [], []>} : vector<64x128xbf16>, vector<128x128xbf16>, vector<64x128xf32> -> vector<64x128xf32>
    %64 = arith.addf %55, %63 : vector<64x128xf32>
    %c2_i32_46 = arith.constant 2 : i32
    %65 = arith.addi %0, %c2_i32_46 : i32
    %c0_47 = arith.constant 0 : index
    %66 = arith.index_cast %65 : i32 to index
    %c1_48 = arith.constant 1 : index
    %c0_49 = arith.constant 0 : index
    %67 = vector.load %arg2[%c0_47, %66, %c1_48, %c0_49] : memref<1x10x10x128xbf16, #tpu.memory_space<vmem>>, vector<1x8x8x128xbf16>
    %68 = vector.shape_cast %67 : vector<1x8x8x128xbf16> to vector<8x8x128xbf16>
    %69 = vector.shape_cast %68 : vector<8x8x128xbf16> to vector<64x128xbf16>
    %c7 = arith.constant 7 : index
    %c0_50 = arith.constant 0 : index
    %c0_51 = arith.constant 0 : index
    %70 = vector.load %arg3[%c7, %c0_50, %c0_51] : memref<9x128x128xbf16, #tpu.memory_space<vmem>>, vector<1x128x128xbf16>
    %71 = vector.shape_cast %70 : vector<1x128x128xbf16> to vector<128x128xbf16>
    %cst_52 = arith.constant dense<0.000000e+00> : vector<64x128xf32>
    %72 = tpu.matmul %69, %71, %cst_52 {dimension_numbers = #tpu.dot_dimension_numbers<[1], [0], [0], [1], [0, 0, 1, 1], [], []>} : vector<64x128xbf16>, vector<128x128xbf16>, vector<64x128xf32> -> vector<64x128xf32>
    %73 = arith.addf %64, %72 : vector<64x128xf32>
    %c2_i32_53 = arith.constant 2 : i32
    %74 = arith.addi %0, %c2_i32_53 : i32
    %c0_54 = arith.constant 0 : index
    %75 = arith.index_cast %74 : i32 to index
    %c2_55 = arith.constant 2 : index
    %c0_56 = arith.constant 0 : index
    %76 = vector.load %arg2[%c0_54, %75, %c2_55, %c0_56] : memref<1x10x10x128xbf16, #tpu.memory_space<vmem>>, vector<1x8x8x128xbf16>
    %77 = vector.shape_cast %76 : vector<1x8x8x128xbf16> to vector<8x8x128xbf16>
    %78 = vector.shape_cast %77 : vector<8x8x128xbf16> to vector<64x128xbf16>
    %c8 = arith.constant 8 : index
    %c0_57 = arith.constant 0 : index
    %c0_58 = arith.constant 0 : index
    %79 = vector.load %arg3[%c8, %c0_57, %c0_58] : memref<9x128x128xbf16, #tpu.memory_space<vmem>>, vector<1x128x128xbf16>
    %80 = vector.shape_cast %79 : vector<1x128x128xbf16> to vector<128x128xbf16>
    %cst_59 = arith.constant dense<0.000000e+00> : vector<64x128xf32>
    %81 = tpu.matmul %78, %80, %cst_59 {dimension_numbers = #tpu.dot_dimension_numbers<[1], [0], [0], [1], [0, 0, 1, 1], [], []>} : vector<64x128xbf16>, vector<128x128xbf16>, vector<64x128xf32> -> vector<64x128xf32>
    %82 = arith.addf %73, %81 : vector<64x128xf32>
    %c0_60 = arith.constant 0 : index
    %c0_61 = arith.constant 0 : index
    %83 = vector.load %arg4[%c0_60, %c0_61] : memref<1x128xf32, #tpu.memory_space<vmem>>, vector<1x128xf32>
    %84 = vector.broadcast %83 : vector<1x128xf32> to vector<64x128xf32>
    %85 = arith.addf %82, %84 : vector<64x128xf32>
    %c0_62 = arith.constant 0 : index
    %c0_63 = arith.constant 0 : index
    %c0_64 = arith.constant 0 : index
    %c0_65 = arith.constant 0 : index
    %86 = vector.load %arg5[%c0_62, %c0_63, %c0_64, %c0_65] : memref<1x8x8x4xbf16, #tpu.memory_space<vmem>>, vector<1x8x8x4xbf16>
    %87 = vector.shape_cast %86 : vector<1x8x8x4xbf16> to vector<8x8x4xbf16>
    %88 = vector.shape_cast %87 : vector<8x8x4xbf16> to vector<64x4xbf16>
    %c0_66 = arith.constant 0 : index
    %c0_67 = arith.constant 0 : index
    %89 = vector.load %arg6[%c0_66, %c0_67] : memref<4x128xbf16, #tpu.memory_space<vmem>>, vector<4x128xbf16>
    %cst_68 = arith.constant dense<0.000000e+00> : vector<64x128xf32>
    %90 = tpu.matmul %88, %89, %cst_68 {dimension_numbers = #tpu.dot_dimension_numbers<[1], [0], [0], [1], [0, 0, 1, 1], [], []>} : vector<64x4xbf16>, vector<4x128xbf16>, vector<64x128xf32> -> vector<64x128xf32>
    %91 = arith.addf %85, %90 : vector<64x128xf32>
    %cst_69 = arith.constant 0.000000e+00 : f32
    %92 = vector.broadcast %cst_69 : f32 to vector<64x128xf32>
    %93 = arith.maximumf %91, %92 : vector<64x128xf32>
    %94 = vector.shape_cast %93 : vector<64x128xf32> to vector<1x8x8x128xf32>
    %95 = arith.truncf %94 : vector<1x8x8x128xf32> to vector<1x8x8x128xbf16>
    %c0_70 = arith.constant 0 : index
    %c0_71 = arith.constant 0 : index
    %c0_72 = arith.constant 0 : index
    %c0_73 = arith.constant 0 : index
    %96 = vector.load %arg7[%c0_70, %c0_71, %c0_72, %c0_73] : memref<1x8x8x128xbf16, #tpu.memory_space<vmem>>, vector<1x8x8x128xbf16>
    tpu.vector_store %arg7[%c0_70, %c0_71, %c0_72, %c0_73], %95 {strides = array<i32>} : memref<1x8x8x128xbf16, #tpu.memory_space<vmem>>, vector<1x8x8x128xbf16>,
    return
  }
  func.func @transform_0(%arg0: i32, %arg1: i32) -> (i32, i32, i32, i32) {
    %c0_i32 = arith.constant 0 : i32
    %c0_i32_0 = arith.constant 0 : i32
    %c0_i32_1 = arith.constant 0 : i32
    %c0_i32_2 = arith.constant 0 : i32
    return %arg0, %c0_i32, %c0_i32_0, %c0_i32_1 : i32, i32, i32, i32
  }
  func.func @transform_1(%arg0: i32, %arg1: i32) -> (i32, i32, i32) {
    %c0_i32 = arith.constant 0 : i32
    %c0_i32_0 = arith.constant 0 : i32
    %c0_i32_1 = arith.constant 0 : i32
    %c0_i32_2 = arith.constant 0 : i32
    return %c0_i32, %c0_i32_0, %c0_i32_1 : i32, i32, i32
  }
  func.func @transform_2(%arg0: i32, %arg1: i32) -> (i32, i32) {
    %c0_i32 = arith.constant 0 : i32
    %c0_i32_0 = arith.constant 0 : i32
    %c0_i32_1 = arith.constant 0 : i32
    return %c0_i32, %c0_i32_0 : i32, i32
  }
  func.func @transform_3(%arg0: i32, %arg1: i32) -> (i32, i32, i32, i32) {
    %c0_i32 = arith.constant 0 : i32
    %c0_i32_0 = arith.constant 0 : i32
    %c0_i32_1 = arith.constant 0 : i32
    return %arg0, %arg1, %c0_i32, %c0_i32_0 : i32, i32, i32, i32
  }
  func.func @transform_4(%arg0: i32, %arg1: i32) -> (i32, i32) {
    %c0_i32 = arith.constant 0 : i32
    %c0_i32_0 = arith.constant 0 : i32
    %c0_i32_1 = arith.constant 0 : i32
    return %c0_i32, %c0_i32_0 : i32, i32
  }
  func.func @transform_5(%arg0: i32, %arg1: i32) -> (i32, i32, i32, i32) {
    %c0_i32 = arith.constant 0 : i32
    %c0_i32_0 = arith.constant 0 : i32
    %c0_i32_1 = arith.constant 0 : i32
    return %arg0, %arg1, %c0_i32, %c0_i32_0 : i32, i32, i32, i32
  }
}

</mosaic_0001>

<llo_original>
// kernel: _forward_impl.2
$region0: #{_forward_impl.2}
  #allocation0 [shape = 'u32[]', space=smem, size = 0x4, offset = 0x4, fixed_abs, tag = 'smem constant byte address 0x4 - core index']
  #allocation1 [shape = 'u32[144,128]{1,0:T(1,128)}', space=vmem, size = 0x12000, scoped, tag = 'internal scratch']
  %s0 = inlined_call_operand.vmem [shape: bf16[128,128], index: 0, kind: input, shape index: {}]
  %s1 = inlined_call_operand.vmem [shape: bf16[128,128], index: 1, kind: input, shape index: {}]
  %s2 = inlined_call_operand.vmem [shape: f32[1,128], index: 2, kind: input, shape index: {}]
  %s3 = inlined_call_operand.vmem [shape: bf16[128,128], index: 3, kind: output, shape index: {}]
  %s4 = sld [smem:[#allocation0]]
  $region22: #{_forward_impl.2} parent=0
    _
  %s6 = ssub.s32 1, %s4
  %s7 = scalar_select 0, %s6, %s4
  // Predicated region
  $region2: #{_forward_impl.2} parent=0 // pred_check
    _
  $region3: #{_forward_impl.2} parent=0 // pred_check_branch
    %9 = sbr.rel (0) target = $region5
  $region4: #{_forward_impl.2} parent=0 // pred_region
    _
  $region5: #{_forward_impl.2} parent=0 // pred_fallthru
    _
  // Predicated region
  $region6: #{_forward_impl.2} parent=0 // pred_check
    _
  $region7: #{_forward_impl.2} parent=0 // pred_check_branch
    %11 = sbr.rel (0) target = $region9
  $region8: #{_forward_impl.2} parent=0 // pred_region
    _
  $region9: #{_forward_impl.2} parent=0 // pred_fallthru
    _
  // Predicated region
  $region10: #{_forward_impl.2} parent=0 // pred_check
    _
  $region11: #{_forward_impl.2} parent=0 // pred_check_branch
    %13 = sbr.rel (0) target = $region13
  $region12: #{_forward_impl.2} parent=0 // pred_region
    _
  $region13: #{_forward_impl.2} parent=0 // pred_fallthru
    _
  %v15 = vld [vmem:[%s0] sm:$0xf]
  %v16 = vld [vmem:[%s0 + $0x4] sm:$0xf]
  %v17 = vld [vmem:[%s0 + $0x8] sm:$0xf]
  %v18 = vld [vmem:[%s0 + $0xc] sm:$0xf]
  %v19 = vld [vmem:[%s0 + $0x10] sm:$0xf]
  %v20 = vld [vmem:[%s0 + $0x14] sm:$0xf]
  %v21 = vld [vmem:[%s0 + $0x18] sm:$0xf]
  %v22 = vld [vmem:[%s0 + $0x1c] sm:$0xf]
  %v23 = vld [vmem:[%s0 + $0x20] sm:$0xf]
  %v24 = vld [vmem:[%s0 + $0x24] sm:$0xf]
  %v25 = vld [vmem:[%s0 + $0x28] sm:$0xf]
  %v26 = vld [vmem:[%s0 + $0x2c] sm:$0xf]
  %v27 = vld [vmem:[%s0 + $0x30] sm:$0xf]
  %v28 = vld [vmem:[%s0 + $0x34] sm:$0xf]
  %v29 = vld [vmem:[%s0 + $0x38] sm:$0xf]
  %v30 = vld [vmem:[%s0 + $0x3c] sm:$0xf]
  %v31 = vld [vmem:[%s1] sm:$0xf]
  %v32 = vld [vmem:[%s1 + $0x4] sm:$0xf]
  %v33 = vld [vmem:[%s1 + $0x8] sm:$0xf]
  %v34 = vld [vmem:[%s1 + $0xc] sm:$0xf]
  %v35 = vld [vmem:[%s1 + $0x10] sm:$0xf]
  %v36 = vld [vmem:[%s1 + $0x14] sm:$0xf]
  %v37 = vld [vmem:[%s1 + $0x18] sm:$0xf]
  %v38 = vld [vmem:[%s1 + $0x1c] sm:$0xf]
  %v39 = vld [vmem:[%s1 + $0x20] sm:$0xf]
  %v40 = vld [vmem:[%s1 + $0x24] sm:$0xf]
  %v41 = vld [vmem:[%s1 + $0x28] sm:$0xf]
  %v42 = vld [vmem:[%s1 + $0x2c] sm:$0xf]
  %v43 = vld [vmem:[%s1 + $0x30] sm:$0xf]
  %v44 = vld [vmem:[%s1 + $0x34] sm:$0xf]
  %v45 = vld [vmem:[%s1 + $0x38] sm:$0xf]
  %v46 = vld [vmem:[%s1 + $0x3c] sm:$0xf]
  %v47 = vld [vmem:[%s2] sm:$0x1]
  %v49 = vlaneseq
  %v50 = vshrl.u32 %v49, 7
  %v51 = vsub.s32 0, %v50
  %v52 = vrot.slane %v47, %v51
  %v70 = vunpack.c.l.b16 %v15
  %v71 = vunpack.c.l.b16 %v16
  %v72 = vunpack.c.l.b16 %v17
  %v73 = vunpack.c.l.b16 %v18
  %v74 = vunpack.c.l.b16 %v19
  %v75 = vunpack.c.l.b16 %v20
  %v76 = vunpack.c.l.b16 %v21
  %v77 = vunpack.c.l.b16 %v22
  %v78 = vunpack.c.l.b16 %v23
  %v79 = vunpack.c.l.b16 %v24
  %v80 = vunpack.c.l.b16 %v25
  %v81 = vunpack.c.l.b16 %v26
  %v82 = vunpack.c.l.b16 %v27
  %v83 = vunpack.c.l.b16 %v28
  %v84 = vunpack.c.l.b16 %v29
  %v85 = vunpack.c.l.b16 %v30
  %v86 = vpack.c.b16 %v71, %v70
  %v87 = vpack.c.b16 %v73, %v72
  %v88 = vpack.c.b16 %v75, %v74
  %v89 = vpack.c.b16 %v77, %v76
  %v90 = vpack.c.b16 %v79, %v78
  %v91 = vpack.c.b16 %v81, %v80
  %v92 = vpack.c.b16 %v83, %v82
  %v93 = vpack.c.b16 %v85, %v84
  %v118 = vunpack.c.l.b16 %v31
  %v119 = vunpack.c.l.b16 %v32
  %v120 = vunpack.c.l.b16 %v33
  %v121 = vunpack.c.l.b16 %v34
  %v122 = vunpack.c.l.b16 %v35
  %v123 = vunpack.c.l.b16 %v36
  %v124 = vunpack.c.l.b16 %v37
  %v125 = vunpack.c.l.b16 %v38
  %v126 = vunpack.c.l.b16 %v39
  %v127 = vunpack.c.l.b16 %v40
  %v128 = vunpack.c.l.b16 %v41
  %v129 = vunpack.c.l.b16 %v42
  %v130 = vunpack.c.l.b16 %v43
  %v131 = vunpack.c.l.b16 %v44
  %v132 = vunpack.c.l.b16 %v45
  %v133 = vunpack.c.l.b16 %v46
  %v134 = vpack.c.b16 %v119, %v118
  %v135 = vpack.c.b16 %v121, %v120
  %v136 = vpack.c.b16 %v123, %v122
  %v137 = vpack.c.b16 %v125, %v124
  %v138 = vpack.c.b16 %v127, %v126
  %v139 = vpack.c.b16 %v129, %v128
  %v140 = vpack.c.b16 %v131, %v130
  %v141 = vpack.c.b16 %v133, %v132
  %150 = vmatprep.subr.bf16.mxu0 0
  %151 = vmatpush1.bf16.msra.mxu0 %v134
  %152 = vmatprep.subr.bf16.mxu0 0
  %153 = vmatpush1.bf16.msra.mxu0 %v135
  %154 = vmatprep.subr.bf16.mxu0 0
  %155 = vmatpush1.bf16.msra.mxu0 %v136
  %156 = vmatprep.subr.bf16.mxu0 0
  %157 = vmatpush1.bf16.msra.mxu0 %v137
  %158 = vmatprep.subr.bf16.mxu0 0
  %159 = vmatpush1.bf16.msra.mxu0 %v138
  %160 = vmatprep.subr.bf16.mxu0 0
  %161 = vmatpush1.bf16.msra.mxu0 %v139
  %162 = vmatprep.subr.bf16.mxu0 0
  %163 = vmatpush1.bf16.msra.mxu0 %v140
  %164 = vmatprep.subr.bf16.mxu0 0
  %165 = vmatpush1.bf16.msra.mxu0 %v141
  %166 = vmatprep.subr.bf16.mxu0 0
  %167 = vmatpush1.bf16.msra.mxu0 0
  %168 = vmatprep.subr.bf16.mxu0 0
  %169 = vmatpush1.bf16.msra.mxu0 0
  %170 = vmatprep.subr.bf16.mxu0 0
  %171 = vmatpush1.bf16.msra.mxu0 0
  %172 = vmatprep.subr.bf16.mxu0 0
  %173 = vmatpush1.bf16.msra.mxu0 0
  %174 = vmatprep.subr.bf16.mxu0 0
  %175 = vmatpush1.bf16.msra.mxu0 0
  %176 = vmatprep.subr.bf16.mxu0 0
  %177 = vmatpush1.bf16.msra.mxu0 0
  %178 = vmatprep.subr.bf16.mxu0 0
  %179 = vmatpush1.bf16.msra.mxu0 0
  %180 = vmatprep.subr.bf16.mxu0 0
  %181 = vmatpush1.bf16.msra.mxu0 0
  %182 = vmatprep.mubr.bf16.mxu0 0
  %183 = vmatmul.mubr.bf16.gmra.mrb[0].mxu0 %v86
  %v184 = vpop.f32.mrb[0].mxu0
  %v185 = vadd.f32 %v52, %v184
  %v186 = vpop.f32.mrb[0].mxu0
  %v187 = vpop.f32.mrb[0].mxu0
  %v188 = vadd.f32 %v52, %v187
  %v189 = vpop.f32.mrb[0].mxu0
  %190 = vmatprep.mubr.bf16.mxu0 0
  %191 = vmatmul.mubr.bf16.gmra.mrb[0].mxu0 %v87
  %v192 = vpop.f32.mrb[0].mxu0
  %v193 = vadd.f32 %v52, %v192
  %v194 = vpop.f32.mrb[0].mxu0
  %v195 = vpop.f32.mrb[0].mxu0
  %v196 = vadd.f32 %v52, %v195
  %v197 = vpop.f32.mrb[0].mxu0
  %198 = vmatprep.mubr.bf16.mxu0 0
  %199 = vmatmul.mubr.bf16.gmra.mrb[0].mxu0 %v88
  %v200 = vpop.f32.mrb[0].mxu0
  %v201 = vadd.f32 %v52, %v200
  %v202 = vpop.f32.mrb[0].mxu0
  %v203 = vpop.f32.mrb[0].mxu0
  %v204 = vadd.f32 %v52, %v203
  %v205 = vpop.f32.mrb[0].mxu0
  %206 = vmatprep.mubr.bf16.mxu0 0
  %207 = vmatmul.mubr.bf16.gmra.mrb[0].mxu0 %v89
  %v208 = vpop.f32.mrb[0].mxu0
  %v209 = vadd.f32 %v52, %v208
  %v210 = vpop.f32.mrb[0].mxu0
  %v211 = vpop.f32.mrb[0].mxu0
  %v212 = vadd.f32 %v52, %v211
  %v213 = vpop.f32.mrb[0].mxu0
  %214 = vmatprep.mubr.bf16.mxu0 0
  %215 = vmatmul.mubr.bf16.gmra.mrb[0].mxu0 %v90
  %v216 = vpop.f32.mrb[0].mxu0
  %v217 = vadd.f32 %v52, %v216
  %v218 = vpop.f32.mrb[0].mxu0
  %v219 = vpop.f32.mrb[0].mxu0
  %v220 = vadd.f32 %v52, %v219
  %v221 = vpop.f32.mrb[0].mxu0
  %222 = vmatprep.mubr.bf16.mxu0 0
  %223 = vmatmul.mubr.bf16.gmra.mrb[0].mxu0 %v91
  %v224 = vpop.f32.mrb[0].mxu0
  %v225 = vadd.f32 %v52, %v224
  %v226 = vpop.f32.mrb[0].mxu0
  %v227 = vpop.f32.mrb[0].mxu0
  %v228 = vadd.f32 %v52, %v227
  %v229 = vpop.f32.mrb[0].mxu0
  %230 = vmatprep.mubr.bf16.mxu0 0
  %231 = vmatmul.mubr.bf16.gmra.mrb[0].mxu0 %v92
  %v232 = vpop.f32.mrb[0].mxu0
  %v233 = vadd.f32 %v52, %v232
  %v234 = vpop.f32.mrb[0].mxu0
  %v235 = vpop.f32.mrb[0].mxu0
  %v236 = vadd.f32 %v52, %v235
  %v237 = vpop.f32.mrb[0].mxu0
  %238 = vmatprep.mubr.bf16.mxu0 0
  %239 = vmatmul.mubr.bf16.gmra.mrb[0].mxu0 %v93
  %v240 = vpop.f32.mrb[0].mxu0
  %v241 = vadd.f32 %v52, %v240
  %v242 = vpop.f32.mrb[0].mxu0
  %v243 = vpop.f32.mrb[0].mxu0
  %v244 = vadd.f32 %v52, %v243
  %v245 = vpop.f32.mrb[0].mxu0
  %246 = vdwg.mxu0
  %v247 = vmax.f32 %v185, 0.0
  %v248 = vmax.f32 %v188, 0.0
  %v249 = vmax.f32 %v193, 0.0
  %v250 = vmax.f32 %v196, 0.0
  %v251 = vmax.f32 %v201, 0.0
  %v252 = vmax.f32 %v204, 0.0
  %v253 = vmax.f32 %v209, 0.0
  %v254 = vmax.f32 %v212, 0.0
  %v255 = vmax.f32 %v217, 0.0
  %v256 = vmax.f32 %v220, 0.0
  %v257 = vmax.f32 %v225, 0.0
  %v258 = vmax.f32 %v228, 0.0
  %v259 = vmax.f32 %v233, 0.0
  %v260 = vmax.f32 %v236, 0.0
  %v261 = vmax.f32 %v241, 0.0
  %v262 = vmax.f32 %v244, 0.0
  %v263 = vpack.c.bf16 %v248, %v247
  %v264 = vpack.c.bf16 %v250, %v249
  %v265 = vpack.c.bf16 %v252, %v251
  %v266 = vpack.c.bf16 %v254, %v253
  %v267 = vpack.c.bf16 %v256, %v255
  %v268 = vpack.c.bf16 %v258, %v257
  %v269 = vpack.c.bf16 %v260, %v259
  %v270 = vpack.c.bf16 %v262, %v261
  %v279 = vunpack.c.l.b16 %v263
  %v280 = vunpack.c.h.b16 %v263
  %v281 = vunpack.c.l.b16 %v264
  %v282 = vunpack.c.h.b16 %v264
  %v283 = vunpack.c.l.b16 %v265
  %v284 = vunpack.c.h.b16 %v265
  %v285 = vunpack.c.l.b16 %v266
  %v286 = vunpack.c.h.b16 %v266
  %v287 = vunpack.c.l.b16 %v267
  %v288 = vunpack.c.h.b16 %v267
  %v289 = vunpack.c.l.b16 %v268
  %v290 = vunpack.c.h.b16 %v268
  %v291 = vunpack.c.l.b16 %v269
  %v292 = vunpack.c.h.b16 %v269
  %v293 = vunpack.c.l.b16 %v270
  %v294 = vunpack.c.h.b16 %v270
  %v295 = vpack.c.b16 %v279, %v279
  %v296 = vpack.c.b16 %v280, %v280
  %v297 = vpack.c.b16 %v281, %v281
  %v298 = vpack.c.b16 %v282, %v282
  %v299 = vpack.c.b16 %v283, %v283
  %v300 = vpack.c.b16 %v284, %v284
  %v301 = vpack.c.b16 %v285, %v285
  %v302 = vpack.c.b16 %v286, %v286
  %v303 = vpack.c.b16 %v287, %v287
  %v304 = vpack.c.b16 %v288, %v288
  %v305 = vpack.c.b16 %v289, %v289
  %v306 = vpack.c.b16 %v290, %v290
  %v307 = vpack.c.b16 %v291, %v291
  %v308 = vpack.c.b16 %v292, %v292
  %v309 = vpack.c.b16 %v293, %v293
  %v310 = vpack.c.b16 %v294, %v294
  %327 = vst [vmem:[%s3] sm:$0xf] %v295
  %328 = vst [vmem:[%s3 + $0x4] sm:$0xf] %v296
  %329 = vst [vmem:[%s3 + $0x8] sm:$0xf] %v297
  %330 = vst [vmem:[%s3 + $0xc] sm:$0xf] %v298
  %331 = vst [vmem:[%s3 + $0x10] sm:$0xf] %v299
  %332 = vst [vmem:[%s3 + $0x14] sm:$0xf] %v300
  %333 = vst [vmem:[%s3 + $0x18] sm:$0xf] %v301
  %334 = vst [vmem:[%s3 + $0x1c] sm:$0xf] %v302
  %335 = vst [vmem:[%s3 + $0x20] sm:$0xf] %v303
  %336 = vst [vmem:[%s3 + $0x24] sm:$0xf] %v304
  %337 = vst [vmem:[%s3 + $0x28] sm:$0xf] %v305
  %338 = vst [vmem:[%s3 + $0x2c] sm:$0xf] %v306
  %339 = vst [vmem:[%s3 + $0x30] sm:$0xf] %v307
  %340 = vst [vmem:[%s3 + $0x34] sm:$0xf] %v308
  %341 = vst [vmem:[%s3 + $0x38] sm:$0xf] %v309
  %342 = vst [vmem:[%s3 + $0x3c] sm:$0xf] %v310
  // Predicated region
  $region14: #{_forward_impl.2} parent=0 // pred_check
    _
  $region15: #{_forward_impl.2} parent=0 // pred_check_branch
    %344 = sbr.rel (0) target = $region17
  $region16: #{_forward_impl.2} parent=0 // pred_region
    _
  $region17: #{_forward_impl.2} parent=0 // pred_fallthru
    _
  // Predicated region
  $region18: #{_forward_impl.2} parent=0 // pred_check
    _
  $region19: #{_forward_impl.2} parent=0 // pred_check_branch
    %346 = sbr.rel (0) target = $region21
  $region20: #{_forward_impl.2} parent=0 // pred_region
    _
  $region21: #{_forward_impl.2} parent=0 // pred_fallthru
    _

// kernel: _forward_impl.3
$region0: #{_forward_impl.3}
  #allocation0 [shape = 'u32[]', space=smem, size = 0x4, offset = 0x4, fixed_abs, tag = 'smem constant byte address 0x4 - core index']
  #allocation1 [shape = 'u32[144,128]{1,0:T(1,128)}', space=vmem, size = 0x12000, scoped, tag = 'internal scratch']
  %s0 = inlined_call_operand.vmem [shape: bf16[2,10,10,128], index: 0, kind: input, shape index: {}]
  %s1 = inlined_call_operand.vmem [shape: bf16[9,128,128], index: 1, kind: input, shape index: {}]
  %s2 = inlined_call_operand.vmem [shape: f32[1,128], index: 2, kind: input, shape index: {}]
  %s3 = inlined_call_operand.vmem [shape: bf16[2,8,8,4], index: 3, kind: input, shape index: {}]
  %s4 = inlined_call_operand.vmem [shape: bf16[4,128], index: 4, kind: input, shape index: {}]
  %s5 = inlined_call_operand.vmem [shape: bf16[2,8,8,128], index: 5, kind: output, shape index: {}]
  %s6 = sld [smem:[#allocation0]]
  $region53: #{_forward_impl.3} parent=0
    _
  %s8 = ssub.s32 1, %s6
  %s9 = scalar_select 0, %s8, %s6
  loop: start=0, step=1, limit=4
  $region2: #{_forward_impl.3} parent=0 // loop_pre_header
    _
  $region3: #{_forward_impl.3} parent=0 // loop_header
    %s11 = sphi 0, %s15
    %p12 = scmp.ge.s32.totalorder %s11, 4
    %s18 = sphi 0, %s30
    %s19 = sphi 0, %s26
    %s20 = sphi 0, %s18
    %s21 = sphi 0, %s19
    %s22 = sphi 0, %s20
    %s23 = sphi 0, %s21
    %s33 = sphi 0, %s35
    %s36 = sphi 0, %s33
    %s37 = sphi 0, %s36
    %s53 = sphi 0, %s37
    %s57 = sphi 0, %s57
    %s59 = sphi 0, %s57
    %s60 = sphi 0, %s59
    %s74 = sphi 0, %s60
    %s78 = sphi 0, %s78
    %s80 = sphi 0, %s78
    %s81 = sphi 0, %s80
    %s95 = sphi 0, %s81
    %s103 = sphi 0, %s105
    %s106 = sphi 0, %s103
    %s107 = sphi 0, %s106
    %s123 = sphi 0, %s107
    %s127 = sphi 0, %s127
    %s129 = sphi 0, %s127
    %s130 = sphi 0, %s129
    %s144 = sphi 0, %s130
    %s152 = sphi 0, %s154
    %s155 = sphi 0, %s152
    %s156 = sphi 0, %s155
    %s172 = sphi 0, %s156
  $region4: #{_forward_impl.3} parent=0 // loop_header_branch
    %14 = sbr.rel (%p12) target = $region8
  $region5: #{_forward_impl.3} parent=0 // loop_body
    %s16 = ssub.s32 %s11, 1
    %s17 = ssub.s32 %s11, 2
    %s24 = sadd.s32 1, %s19
    %p25 = scmp.ge.s32.totalorder %s24, 1
    %s26 = scalar_select %p25, 0, %s24
    %s27 = sadd.s32 1, %s18
    %s28 = scalar_select %p25, %s27, %s18
    %p29 = scmp.ge.s32.totalorder %s28, 2
    %s30 = scalar_select %p29, 0, %s28
    %s31 = ssub.s32 %s18, %s30
    %p32 = scmp.eq.s32.totalorder %s31, 0
    %s34 = sadd.s32 %s33, 1
    %s35 = scalar_select %p32, %s33, %s34
    %p38 = pneg %p32
    %p39 = scmp.eq.s32.totalorder %s11, 1
    %p40 = por %p38, %p39
    %p41 = scmp.ne.s32.totalorder %s33, %s36
    %p42 = scmp.eq.s32.totalorder %s11, 0
    %p43 = por %p41, %p42
    %p44 = scmp.ne.s32.totalorder %s33, %s36
    %p45 = scmp.eq.s32.totalorder %s16, 1
    %p46 = por %p44, %p45
    %p47 = scmp.ne.s32.totalorder %s36, %s37
    %p48 = scmp.eq.s32.totalorder %s16, 0
    %p49 = por %p47, %p48
    %p50 = scmp.ne.s32.totalorder %s36, %s37
    %p51 = scmp.eq.s32.totalorder %s17, 1
    %p52 = por %p50, %p51
    %p54 = scmp.ne.s32.totalorder %s37, %s53
    %p55 = scmp.eq.s32.totalorder %s17, 0
    %p56 = por %p54, %p55
    %s58 = sadd.s32 %s57, 1
    %p61 = scmp.eq.s32.totalorder %s11, 1
    %p62 = scmp.ne.s32.totalorder %s57, %s59
    %p63 = scmp.eq.s32.totalorder %s11, 0
    %p64 = por %p62, %p63
    %p65 = scmp.ne.s32.totalorder %s57, %s59
    %p66 = scmp.eq.s32.totalorder %s16, 1
    %p67 = por %p65, %p66
    %p68 = scmp.ne.s32.totalorder %s59, %s60
    %p69 = scmp.eq.s32.totalorder %s16, 0
    %p70 = por %p68, %p69
    %p71 = scmp.ne.s32.totalorder %s59, %s60
    %p72 = scmp.eq.s32.totalorder %s17, 1
    %p73 = por %p71, %p72
    %p75 = scmp.ne.s32.totalorder %s60, %s74
    %p76 = scmp.eq.s32.totalorder %s17, 0
    %p77 = por %p75, %p76
    %s79 = sadd.s32 %s78, 1
    %p82 = scmp.eq.s32.totalorder %s11, 1
    %p83 = scmp.ne.s32.totalorder %s78, %s80
    %p84 = scmp.eq.s32.totalorder %s11, 0
    %p85 = por %p83, %p84
    %p86 = scmp.ne.s32.totalorder %s78, %s80
    %p87 = scmp.eq.s32.totalorder %s16, 1
    %p88 = por %p86, %p87
    %p89 = scmp.ne.s32.totalorder %s80, %s81
    %p90 = scmp.eq.s32.totalorder %s16, 0
    %p91 = por %p89, %p90
    %p92 = scmp.ne.s32.totalorder %s80, %s81
    %p93 = scmp.eq.s32.totalorder %s17, 1
    %p94 = por %p92, %p93
    %p96 = scmp.ne.s32.totalorder %s81, %s95
    %p97 = scmp.eq.s32.totalorder %s17, 0
    %p98 = por %p96, %p97
    %s99 = ssub.s32 %s18, %s30
    %s100 = ssub.s32 %s19, %s26
    %s101 = sor.u32 %s99, %s100
    %p102 = scmp.eq.s32.totalorder %s101, 0
    %s104 = sadd.s32 %s103, 1
    %s105 = scalar_select %p102, %s103, %s104
    %p108 = pneg %p102
    %p109 = scmp.eq.s32.totalorder %s11, 1
    %p110 = por %p108, %p109
    %p111 = scmp.ne.s32.totalorder %s103, %s106
    %p112 = scmp.eq.s32.totalorder %s11, 0
    %p113 = por %p111, %p112
    %p114 = scmp.ne.s32.totalorder %s103, %s106
    %p115 = scmp.eq.s32.totalorder %s16, 1
    %p116 = por %p114, %p115
    %p117 = scmp.ne.s32.totalorder %s106, %s107
    %p118 = scmp.eq.s32.totalorder %s16, 0
    %p119 = por %p117, %p118
    %p120 = scmp.ne.s32.totalorder %s106, %s107
    %p121 = scmp.eq.s32.totalorder %s17, 1
    %p122 = por %p120, %p121
    %p124 = scmp.ne.s32.totalorder %s107, %s123
    %p125 = scmp.eq.s32.totalorder %s17, 0
    %p126 = por %p124, %p125
    %s128 = sadd.s32 %s127, 1
    %p131 = scmp.eq.s32.totalorder %s11, 1
    %p132 = scmp.ne.s32.totalorder %s127, %s129
    %p133 = scmp.eq.s32.totalorder %s11, 0
    %p134 = por %p132, %p133
    %p135 = scmp.ne.s32.totalorder %s127, %s129
    %p136 = scmp.eq.s32.totalorder %s16, 1
    %p137 = por %p135, %p136
    %p138 = scmp.ne.s32.totalorder %s129, %s130
    %p139 = scmp.eq.s32.totalorder %s16, 0
    %p140 = por %p138, %p139
    %p141 = scmp.ne.s32.totalorder %s129, %s130
    %p142 = scmp.eq.s32.totalorder %s17, 1
    %p143 = por %p141, %p142
    %p145 = scmp.ne.s32.totalorder %s130, %s144
    %p146 = scmp.eq.s32.totalorder %s17, 0
    %p147 = por %p145, %p146
    %s148 = ssub.s32 %s18, %s30
    %s149 = ssub.s32 %s19, %s26
    %s150 = sor.u32 %s148, %s149
    %p151 = scmp.eq.s32.totalorder %s150, 0
    %s153 = sadd.s32 %s152, 1
    %s154 = scalar_select %p151, %s152, %s153
    %p157 = pneg %p151
    %p158 = scmp.eq.s32.totalorder %s11, 1
    %p159 = por %p157, %p158
    %p160 = scmp.ne.s32.totalorder %s152, %s155
    %p161 = scmp.eq.s32.totalorder %s11, 0
    %p162 = por %p160, %p161
    %p163 = scmp.ne.s32.totalorder %s152, %s155
    %p164 = scmp.eq.s32.totalorder %s16, 1
    %p165 = por %p163, %p164
    %p166 = scmp.ne.s32.totalorder %s155, %s156
    %p167 = scmp.eq.s32.totalorder %s16, 0
    %p168 = por %p166, %p167
    %p169 = scmp.ne.s32.totalorder %s155, %s156
    %p170 = scmp.eq.s32.totalorder %s17, 1
    %p171 = por %p169, %p170
    %p173 = scmp.ne.s32.totalorder %s156, %s172
    %p174 = scmp.eq.s32.totalorder %s17, 0
    %p175 = por %p173, %p174
    %p176 = scmp.le.s32.totalorder 1, %s11
    %p177 = scmp.lt.s32.totalorder %s11, 3
    %p178 = pnand %p176, %p177
    %p179 = pneg %p178
    // Predicated region
    $region9: #{_forward_impl.3} parent=5 // pred_check
      _
    $region10: #{_forward_impl.3} parent=5 // pred_check_branch
      %181 = sbr.rel (%p178) target = $region12
    $region11: #{_forward_impl.3} parent=5 // pred_region
      %s182 = ssub.s32 %s11, 1
      // Predicated region
      $region13: #{_forward_impl.3} parent=11 // pred_check
        %p183 = pneg %p70
      $region14: #{_forward_impl.3} parent=11 // pred_check_branch
        %185 = sbr.rel (%p183) target = $region16
      $region15: #{_forward_impl.3} parent=11 // pred_region
        _
      $region16: #{_forward_impl.3} parent=11 // pred_fallthru
        _
      // Predicated region
      $region17: #{_forward_impl.3} parent=11 // pred_check
        %p186 = pneg %p91
      $region18: #{_forward_impl.3} parent=11 // pred_check_branch
        %188 = sbr.rel (%p186) target = $region20
      $region19: #{_forward_impl.3} parent=11 // pred_region
        _
      $region20: #{_forward_impl.3} parent=11 // pred_fallthru
        _
      // Predicated region
      $region21: #{_forward_impl.3} parent=11 // pred_check
        %p189 = pneg %p140
      $region22: #{_forward_impl.3} parent=11 // pred_check_branch
        %191 = sbr.rel (%p189) target = $region24
      $region23: #{_forward_impl.3} parent=11 // pred_region
        _
      $region24: #{_forward_impl.3} parent=11 // pred_fallthru
        _
    $region12: #{_forward_impl.3} parent=5 // pred_fallthru
      _
    %p192 = scmp.lt.s32.totalorder %s11, 2
    // Predicated region
    $region25: #{_forward_impl.3} parent=5 // pred_check
      %p193 = pneg %p192
    $region26: #{_forward_impl.3} parent=5 // pred_check_branch
      %195 = sbr.rel (%p193) target = $region28
    $region27: #{_forward_impl.3} parent=5 // pred_region
      // Predicated region
      $region29: #{_forward_impl.3} parent=27 // pred_check
        %p196 = pneg %p43
      $region30: #{_forward_impl.3} parent=27 // pred_check_branch
        %198 = sbr.rel (%p196) target = $region32
      $region31: #{_forward_impl.3} parent=27 // pred_region
        %p199 = scmp.lt.s32.totalorder %s18, 1
        %s200 = scalar_select %p199, %s18, 1
        %s201 = smul.addr %s200, 20
        %s202 = smul.addr %s201, 4
        %s203 = scalar_lea.vmem %s0, %s202
      $region32: #{_forward_impl.3} parent=27 // pred_fallthru
        _
      // Predicated region
      $region33: #{_forward_impl.3} parent=27 // pred_check
        %p204 = pneg %p113
      $region34: #{_forward_impl.3} parent=27 // pred_check_branch
        %206 = sbr.rel (%p204) target = $region36
      $region35: #{_forward_impl.3} parent=27 // pred_region
        %s207 = smul.u32 8, %s19
        %p208 = scmp.lt.s32.totalorder %s18, 1
        %s209 = scalar_select %p208, %s18, 1
        %p210 = scmp.lt.s32.totalorder %s207, 7
        %s211 = scalar_select %p210, %s207, 7
        %s212 = smul.addr %s209, 8
        %s213 = sadd.s32 %s211, %s212
        %s214 = smul.addr %s213, 4
        %s215 = scalar_lea.vmem %s3, %s214
        %s216 = smul.u32 8, %s19
      $region36: #{_forward_impl.3} parent=27 // pred_fallthru
        _
    $region28: #{_forward_impl.3} parent=5 // pred_fallthru
      _
    %p217 = scmp.le.s32.totalorder 1, %s11
    %p218 = scmp.lt.s32.totalorder %s11, 3
    %p219 = pnand %p217, %p218
    %p220 = pneg %p219
    // Predicated region
    $region37: #{_forward_impl.3} parent=5 // pred_check
      _
    $region38: #{_forward_impl.3} parent=5 // pred_check_branch
      %222 = sbr.rel (%p219) target = $region40
    $region39: #{_forward_impl.3} parent=5 // pred_region
      %s223 = ssub.s32 %s11, 1
      %p224 = scmp.lt.s32.totalorder %s20, 1
      %s225 = scalar_select %p224, %s20, 1
      %s226 = smul.addr %s225, 20
      %s227 = smul.addr %s226, 4
      %s228 = scalar_lea.vmem %s0, %s227
      %p229 = pneg %p49
      %p230 = pneg %p46
      %p231 = pneg %p70
      %p232 = pneg %p67
      %p233 = pneg %p91
      %p234 = pneg %p88
      %s235 = smul.u32 8, %s21
      %p236 = scmp.lt.s32.totalorder %s20, 1
      %s237 = scalar_select %p236, %s20, 1
      %p238 = scmp.lt.s32.totalorder %s235, 7
      %s239 = scalar_select %p238, %s235, 7
      %s240 = smul.addr %s237, 8
      %s241 = sadd.s32 %s239, %s240
      %s242 = smul.addr %s241, 4
      %s243 = scalar_lea.vmem %s3, %s242
      %p244 = pneg %p119
      %p245 = pneg %p116
      %p246 = pneg %p140
      %p247 = pneg %p137
      %p248 = pneg %p168
      %p249 = pneg %p165
      %s250 = smul.u32 8, %s21
      %p251 = scmp.lt.s32.totalorder %s20, 1
      %s252 = scalar_select %p251, %s20, 1
      %p253 = scmp.lt.s32.totalorder %s250, 7
      %s254 = scalar_select %p253, %s250, 7
      %s255 = smul.addr %s252, 8
      %s256 = sadd.s32 %s254, %s255
      %s257 = smul.addr %s256, 4
      %s258 = scalar_lea.vmem %s5, %s257
      %p259 = scmp.lt.s32.totalorder %s20, 1
      %s260 = scalar_select %p259, %s20, 1
      %s261 = smul.addr %s260, 20
      %s262 = smul.addr %s261, 4
      %s263 = scalar_lea.vmem %s0, %s262
      %s264 = smul.u32 8, %s21
      %p265 = scmp.lt.s32.totalorder %s20, 1
      %s266 = scalar_select %p265, %s20, 1
      %p267 = scmp.lt.s32.totalorder %s264, 7
      %s268 = scalar_select %p267, %s264, 7
      %s269 = smul.addr %s266, 8
      %s270 = sadd.s32 %s268, %s269
      %s271 = smul.addr %s270, 4
      %s272 = scalar_lea.vmem %s3, %s271
      %s273 = smul.u32 8, %s21
      %s274 = smul.u32 8, %s21
      %p275 = scmp.lt.s32.totalorder %s20, 1
      %s276 = scalar_select %p275, %s20, 1
      %p277 = scmp.lt.s32.totalorder %s274, 7
      %s278 = scalar_select %p277, %s274, 7
      %s279 = smul.addr %s276, 8
      %s280 = sadd.s32 %s278, %s279
      %s281 = smul.addr %s280, 4
      %s282 = scalar_lea.vmem %s5, %s281
      %s283 = smul.u32 8, %s21
      %s285 = smul.u32 %s21, 8
      %s286 = smul.u32 %s285, 2
      %s287 = smul.addr %s286, 4
      %s288 = scalar_lea.vmem %s263, %s287
      %v289 = vld [vmem:[%s288] sm:$0xf]
      %v290 = vld [vmem:[%s288 + $0x8] sm:$0xf]
      %v291 = vld [vmem:[%s288 + $0x10] sm:$0xf]
      %v292 = vld [vmem:[%s288 + $0x18] sm:$0xf]
      %v293 = vld [vmem:[%s288 + $0x20] sm:$0xf]
      %v294 = vld [vmem:[%s288 + $0x28] sm:$0xf]
      %v295 = vld [vmem:[%s288 + $0x30] sm:$0xf]
      %v296 = vld [vmem:[%s288 + $0x38] sm:$0xf]
      %v297 = vld [vmem:[%s1] sm:$0xf]
      %v298 = vld [vmem:[%s1 + $0x4] sm:$0xf]
      %v299 = vld [vmem:[%s1 + $0x8] sm:$0xf]
      %v300 = vld [vmem:[%s1 + $0xc] sm:$0xf]
      %v301 = vld [vmem:[%s1 + $0x10] sm:$0xf]
      %v302 = vld [vmem:[%s1 + $0x14] sm:$0xf]
      %v303 = vld [vmem:[%s1 + $0x18] sm:$0xf]
      %v304 = vld [vmem:[%s1 + $0x1c] sm:$0xf]
      %v305 = vld [vmem:[%s1 + $0x20] sm:$0xf]
      %v306 = vld [vmem:[%s1 + $0x24] sm:$0xf]
      %v307 = vld [vmem:[%s1 + $0x28] sm:$0xf]
      %v308 = vld [vmem:[%s1 + $0x2c] sm:$0xf]
      %v309 = vld [vmem:[%s1 + $0x30] sm:$0xf]
      %v310 = vld [vmem:[%s1 + $0x34] sm:$0xf]
      %v311 = vld [vmem:[%s1 + $0x38] sm:$0xf]
      %v312 = vld [vmem:[%s1 + $0x3c] sm:$0xf]
      %v313 = vld [vmem:[%s288 + $0x4] sm:$0x1]
      %v314 = vld [vmem:[%s288 + $0xc] sm:$0x1]
      %v315 = vld [vmem:[%s288 + $0x14] sm:$0x1]
      %v316 = vld [vmem:[%s288 + $0x1c] sm:$0x1]
      %v317 = vld [vmem:[%s288 + $0x24] sm:$0x1]
      %v318 = vld [vmem:[%s288 + $0x2c] sm:$0x1]
      %v319 = vld [vmem:[%s288 + $0x34] sm:$0x1]
      %v320 = vld [vmem:[%s288 + $0x3c] sm:$0x1]
      %vm321 = vsmask.f32 3328
      %vm322 = vsmask.f32 7440
      %vm323 = vmor %vm321, %vm322
      %v325 = vshrl.u32 %v289, 16
      %v327 = vrot.slane %v325, 4
      %v328 = vshll.u32 %v289, 16
      %v330 = vrot.slane %v328, 5
      %v331 = vor.u32 %v327, %v330
      %v332 = vrot.slane %v331, 4
      %v334 = vshll.u32 %v313, 16
      %v336 = vrot.slane %v334, 5
      %v337 = vsel %vm323, %v332, %v336
      %v339 = vshrl.u32 %v290, 16
      %v341 = vrot.slane %v339, 4
      %v342 = vshll.u32 %v290, 16
      %v344 = vrot.slane %v342, 5
      %v345 = vor.u32 %v341, %v344
      %v346 = vrot.slane %v345, 4
      %v348 = vshll.u32 %v314, 16
      %v350 = vrot.slane %v348, 5
      %v351 = vsel %vm323, %v346, %v350
      %v353 = vshrl.u32 %v291, 16
      %v355 = vrot.slane %v353, 4
      %v356 = vshll.u32 %v291, 16
      %v358 = vrot.slane %v356, 5
      %v359 = vor.u32 %v355, %v358
      %v360 = vrot.slane %v359, 4
      %v362 = vshll.u32 %v315, 16
      %v364 = vrot.slane %v362, 5
      %v365 = vsel %vm323, %v360, %v364
      %v367 = vshrl.u32 %v292, 16
      %v369 = vrot.slane %v367, 4
      %v370 = vshll.u32 %v292, 16
      %v372 = vrot.slane %v370, 5
      %v373 = vor.u32 %v369, %v372
      %v374 = vrot.slane %v373, 4
      %v376 = vshll.u32 %v316, 16
      %v378 = vrot.slane %v376, 5
      %v379 = vsel %vm323, %v374, %v378
      %v381 = vshrl.u32 %v293, 16
      %v383 = vrot.slane %v381, 4
      %v384 = vshll.u32 %v293, 16
      %v386 = vrot.slane %v384, 5
      %v387 = vor.u32 %v383, %v386
      %v388 = vrot.slane %v387, 4
      %v390 = vshll.u32 %v317, 16
      %v392 = vrot.slane %v390, 5
      %v393 = vsel %vm323, %v388, %v392
      %v395 = vshrl.u32 %v294, 16
      %v397 = vrot.slane %v395, 4
      %v398 = vshll.u32 %v294, 16
      %v400 = vrot.slane %v398, 5
      %v401 = vor.u32 %v397, %v400
      %v402 = vrot.slane %v401, 4
      %v404 = vshll.u32 %v318, 16
      %v406 = vrot.slane %v404, 5
      %v407 = vsel %vm323, %v402, %v406
      %v409 = vshrl.u32 %v295, 16
      %v411 = vrot.slane %v409, 4
      %v412 = vshll.u32 %v295, 16
      %v414 = vrot.slane %v412, 5
      %v415 = vor.u32 %v411, %v414
      %v416 = vrot.slane %v415, 4
      %v418 = vshll.u32 %v319, 16
      %v420 = vrot.slane %v418, 5
      %v421 = vsel %vm323, %v416, %v420
      %v423 = vshrl.u32 %v296, 16
      %v425 = vrot.slane %v423, 4
      %v426 = vshll.u32 %v296, 16
      %v428 = vrot.slane %v426, 5
      %v429 = vor.u32 %v425, %v428
      %v430 = vrot.slane %v429, 4
      %v432 = vshll.u32 %v320, 16
      %v434 = vrot.slane %v432, 5
      %v435 = vsel %vm323, %v430, %v434
      %s436 = scalar_lea.vmem %s1, 64
      %v437 = vld [vmem:[%s436] sm:$0xf]
      %v438 = vld [vmem:[%s436 + $0x4] sm:$0xf]
      %v439 = vld [vmem:[%s436 + $0x8] sm:$0xf]
      %v440 = vld [vmem:[%s436 + $0xc] sm:$0xf]
      %v441 = vld [vmem:[%s436 + $0x10] sm:$0xf]
      %v442 = vld [vmem:[%s436 + $0x14] sm:$0xf]
      %v443 = vld [vmem:[%s436 + $0x18] sm:$0xf]
      %v444 = vld [vmem:[%s436 + $0x1c] sm:$0xf]
      %v445 = vld [vmem:[%s436 + $0x20] sm:$0xf]
      %v446 = vld [vmem:[%s436 + $0x24] sm:$0xf]
      %v447 = vld [vmem:[%s436 + $0x28] sm:$0xf]
      %v448 = vld [vmem:[%s436 + $0x2c] sm:$0xf]
      %v449 = vld [vmem:[%s436 + $0x30] sm:$0xf]
      %v450 = vld [vmem:[%s436 + $0x34] sm:$0xf]
      %v451 = vld [vmem:[%s436 + $0x38] sm:$0xf]
      %v452 = vld [vmem:[%s436 + $0x3c] sm:$0xf]
      %v453 = vunpack.c.l.b16 %v337
      %v454 = vunpack.c.l.b16 %v351
      %v455 = vunpack.c.l.b16 %v365
      %v456 = vunpack.c.l.b16 %v379
      %v457 = vunpack.c.l.b16 %v393
      %v458 = vunpack.c.l.b16 %v407
      %v459 = vunpack.c.l.b16 %v421
      %v460 = vunpack.c.l.b16 %v435
      %v461 = vpack.c.b16 %v454, %v453
      %v462 = vpack.c.b16 %v456, %v455
      %v463 = vpack.c.b16 %v458, %v457
      %v464 = vpack.c.b16 %v460, %v459
      %v485 = vunpack.c.l.b16 %v437
      %v486 = vunpack.c.l.b16 %v438
      %v487 = vunpack.c.l.b16 %v439
      %v488 = vunpack.c.l.b16 %v440
      %v489 = vunpack.c.l.b16 %v441
      %v490 = vunpack.c.l.b16 %v442
      %v491 = vunpack.c.l.b16 %v443
      %v492 = vunpack.c.l.b16 %v444
      %v493 = vunpack.c.l.b16 %v445
      %v494 = vunpack.c.l.b16 %v446
      %v495 = vunpack.c.l.b16 %v447
      %v496 = vunpack.c.l.b16 %v448
      %v497 = vunpack.c.l.b16 %v449
      %v498 = vunpack.c.l.b16 %v450
      %v499 = vunpack.c.l.b16 %v451
      %v500 = vunpack.c.l.b16 %v452
      %v501 = vpack.c.b16 %v486, %v485
      %v502 = vpack.c.b16 %v488, %v487
      %v503 = vpack.c.b16 %v490, %v489
      %v504 = vpack.c.b16 %v492, %v491
      %v505 = vpack.c.b16 %v494, %v493
      %v506 = vpack.c.b16 %v496, %v495
      %v507 = vpack.c.b16 %v498, %v497
      %v508 = vpack.c.b16 %v500, %v499
      %517 = vmatprep.subr.bf16.mxu0 0
      %518 = vmatpush1.bf16.msra.mxu0 %v501
      %519 = vmatprep.subr.bf16.mxu0 0
      %520 = vmatpush1.bf16.msra.mxu0 %v502
      %521 = vmatprep.subr.bf16.mxu0 0
      %522 = vmatpush1.bf16.msra.mxu0 %v503
      %523 = vmatprep.subr.bf16.mxu0 0
      %524 = vmatpush1.bf16.msra.mxu0 %v504
      %525 = vmatprep.subr.bf16.mxu0 0
      %526 = vmatpush1.bf16.msra.mxu0 %v505
      %527 = vmatprep.subr.bf16.mxu0 0
      %528 = vmatpush1.bf16.msra.mxu0 %v506
      %529 = vmatprep.subr.bf16.mxu0 0
      %530 = vmatpush1.bf16.msra.mxu0 %v507
      %531 = vmatprep.subr.bf16.mxu0 0
      %532 = vmatpush1.bf16.msra.mxu0 %v508
      %533 = vmatprep.subr.bf16.mxu0 0
      %534 = vmatpush1.bf16.msra.mxu0 0
      %535 = vmatprep.subr.bf16.mxu0 0
      %536 = vmatpush1.bf16.msra.mxu0 0
      %537 = vmatprep.subr.bf16.mxu0 0
      %538 = vmatpush1.bf16.msra.mxu0 0
      %539 = vmatprep.subr.bf16.mxu0 0
      %540 = vmatpush1.bf16.msra.mxu0 0
      %541 = vmatprep.subr.bf16.mxu0 0
      %542 = vmatpush1.bf16.msra.mxu0 0
      %543 = vmatprep.subr.bf16.mxu0 0
      %544 = vmatpush1.bf16.msra.mxu0 0
      %545 = vmatprep.subr.bf16.mxu0 0
      %546 = vmatpush1.bf16.msra.mxu0 0
      %547 = vmatprep.subr.bf16.mxu0 0
      %548 = vmatpush1.bf16.msra.mxu0 0
      %549 = vmatprep.mubr.bf16.mxu0 0
      %550 = vmatmul.mubr.bf16.gmra.mrb[0].mxu0 %v461
      %v551 = vpop.f32.mrb[0].mxu0
      %v552 = vadd.f32 0.0, %v551
      %v553 = vpop.f32.mrb[0].mxu0
      %v554 = vpop.f32.mrb[0].mxu0
      %v555 = vadd.f32 0.0, %v554
      %v556 = vpop.f32.mrb[0].mxu0
      %557 = vmatprep.mubr.bf16.mxu0 0
      %558 = vmatmul.mubr.bf16.gmra.mrb[0].mxu0 %v462
      %v559 = vpop.f32.mrb[0].mxu0
      %v560 = vadd.f32 0.0, %v559
      %v561 = vpop.f32.mrb[0].mxu0
      %v562 = vpop.f32.mrb[0].mxu0
      %v563 = vadd.f32 0.0, %v562
      %v564 = vpop.f32.mrb[0].mxu0
      %565 = vmatprep.mubr.bf16.mxu0 0
      %566 = vmatmul.mubr.bf16.gmra.mrb[0].mxu0 %v463
      %v567 = vpop.f32.mrb[0].mxu0
      %v568 = vadd.f32 0.0, %v567
      %v569 = vpop.f32.mrb[0].mxu0
      %v570 = vpop.f32.mrb[0].mxu0
      %v571 = vadd.f32 0.0, %v570
      %v572 = vpop.f32.mrb[0].mxu0
      %573 = vmatprep.mubr.bf16.mxu0 0
      %574 = vmatmul.mubr.bf16.gmra.mrb[0].mxu0 %v464
      %v575 = vpop.f32.mrb[0].mxu0
      %v576 = vadd.f32 0.0, %v575
      %v577 = vpop.f32.mrb[0].mxu0
      %v578 = vpop.f32.mrb[0].mxu0
      %v579 = vadd.f32 0.0, %v578
      %v580 = vpop.f32.mrb[0].mxu0
      %581 = vdwg.mxu0
      %v590 = vunpack.c.l.b16 %v289
      %v591 = vunpack.c.l.b16 %v290
      %v592 = vunpack.c.l.b16 %v291
      %v593 = vunpack.c.l.b16 %v292
      %v594 = vunpack.c.l.b16 %v293
      %v595 = vunpack.c.l.b16 %v294
      %v596 = vunpack.c.l.b16 %v295
      %v597 = vunpack.c.l.b16 %v296
      %v598 = vpack.c.b16 %v591, %v590
      %v599 = vpack.c.b16 %v593, %v592
      %v600 = vpack.c.b16 %v595, %v594
      %v601 = vpack.c.b16 %v597, %v596
      %v622 = vunpack.c.l.b16 %v297
      %v623 = vunpack.c.l.b16 %v298
      %v624 = vunpack.c.l.b16 %v299
      %v625 = vunpack.c.l.b16 %v300
      %v626 = vunpack.c.l.b16 %v301
      %v627 = vunpack.c.l.b16 %v302
      %v628 = vunpack.c.l.b16 %v303
      %v629 = vunpack.c.l.b16 %v304
      %v630 = vunpack.c.l.b16 %v305
      %v631 = vunpack.c.l.b16 %v306
      %v632 = vunpack.c.l.b16 %v307
      %v633 = vunpack.c.l.b16 %v308
      %v634 = vunpack.c.l.b16 %v309
      %v635 = vunpack.c.l.b16 %v310
      %v636 = vunpack.c.l.b16 %v311
      %v637 = vunpack.c.l.b16 %v312
      %v638 = vpack.c.b16 %v623, %v622
      %v639 = vpack.c.b16 %v625, %v624
      %v640 = vpack.c.b16 %v627, %v626
      %v641 = vpack.c.b16 %v629, %v628
      %v642 = vpack.c.b16 %v631, %v630
      %v643 = vpack.c.b16 %v633, %v632
      %v644 = vpack.c.b16 %v635, %v634
      %v645 = vpack.c.b16 %v637, %v636
      %654 = vmatprep.subr.bf16.mxu0 0
      %655 = vmatpush1.bf16.msra.mxu0 %v638
      %656 = vmatprep.subr.bf16.mxu0 0
      %657 = vmatpush1.bf16.msra.mxu0 %v639
      %658 = vmatprep.subr.bf16.mxu0 0
      %659 = vmatpush1.bf16.msra.mxu0 %v640
      %660 = vmatprep.subr.bf16.mxu0 0
      %661 = vmatpush1.bf16.msra.mxu0 %v641
      %662 = vmatprep.subr.bf16.mxu0 0
      %663 = vmatpush1.bf16.msra.mxu0 %v642
      %664 = vmatprep.subr.bf16.mxu0 0
      %665 = vmatpush1.bf16.msra.mxu0 %v643
      %666 = vmatprep.subr.bf16.mxu0 0
      %667 = vmatpush1.bf16.msra.mxu0 %v644
      %668 = vmatprep.subr.bf16.mxu0 0
      %669 = vmatpush1.bf16.msra.mxu0 %v645
      %670 = vmatprep.subr.bf16.mxu0 0
      %671 = vmatpush1.bf16.msra.mxu0 0
      %672 = vmatprep.subr.bf16.mxu0 0
      %673 = vmatpush1.bf16.msra.mxu0 0
      %674 = vmatprep.subr.bf16.mxu0 0
      %675 = vmatpush1.bf16.msra.mxu0 0
      %676 = vmatprep.subr.bf16.mxu0 0
      %677 = vmatpush1.bf16.msra.mxu0 0
      %678 = vmatprep.subr.bf16.mxu0 0
      %679 = vmatpush1.bf16.msra.mxu0 0
      %680 = vmatprep.subr.bf16.mxu0 0
      %681 = vmatpush1.bf16.msra.mxu0 0
      %682 = vmatprep.subr.bf16.mxu0 0
      %683 = vmatpush1.bf16.msra.mxu0 0
      %684 = vmatprep.subr.bf16.mxu0 0
      %685 = vmatpush1.bf16.msra.mxu0 0
      %686 = vmatprep.mubr.bf16.mxu0 0
      %687 = vmatmul.mubr.bf16.gmra.mrb[0].mxu0 %v598
      %v688 = vpop.f32.mrb[0].mxu0
      %v689 = vadd.f32 %v552, %v688
      %v690 = vpop.f32.mrb[0].mxu0
      %v691 = vpop.f32.mrb[0].mxu0
      %v692 = vadd.f32 %v555, %v691
      %v693 = vpop.f32.mrb[0].mxu0
      %694 = vmatprep.mubr.bf16.mxu0 0
      %695 = vmatmul.mubr.bf16.gmra.mrb[0].mxu0 %v599
      %v696 = vpop.f32.mrb[0].mxu0
      %v697 = vadd.f32 %v560, %v696
      %v698 = vpop.f32.mrb[0].mxu0
      %v699 = vpop.f32.mrb[0].mxu0
      %v700 = vadd.f32 %v563, %v699
      %v701 = vpop.f32.mrb[0].mxu0
      %702 = vmatprep.mubr.bf16.mxu0 0
      %703 = vmatmul.mubr.bf16.gmra.mrb[0].mxu0 %v600
      %v704 = vpop.f32.mrb[0].mxu0
      %v705 = vadd.f32 %v568, %v704
      %v706 = vpop.f32.mrb[0].mxu0
      %v707 = vpop.f32.mrb[0].mxu0
      %v708 = vadd.f32 %v571, %v707
      %v709 = vpop.f32.mrb[0].mxu0
      %710 = vmatprep.mubr.bf16.mxu0 0
      %711 = vmatmul.mubr.bf16.gmra.mrb[0].mxu0 %v601
      %v712 = vpop.f32.mrb[0].mxu0
      %v713 = vadd.f32 %v576, %v712
      %v714 = vpop.f32.mrb[0].mxu0
      %v715 = vpop.f32.mrb[0].mxu0
      %v716 = vadd.f32 %v579, %v715
      %v717 = vpop.f32.mrb[0].mxu0
      %718 = vdwg.mxu0
      %v719 = vld [vmem:[%s288] sm:$0xe]
      %v720 = vld [vmem:[%s288 + $0x8] sm:$0xe]
      %v721 = vld [vmem:[%s288 + $0x10] sm:$0xe]
      %v722 = vld [vmem:[%s288 + $0x18] sm:$0xe]
      %v723 = vld [vmem:[%s288 + $0x20] sm:$0xe]
      %v724 = vld [vmem:[%s288 + $0x28] sm:$0xe]
      %v725 = vld [vmem:[%s288 + $0x30] sm:$0xe]
      %v726 = vld [vmem:[%s288 + $0x38] sm:$0xe]
      %vm743 = vcmask 1042432
      %vm744 = vcmask 1046532
      %vm745 = vmor %vm743, %vm744
      %v746 = vrot.slane %v719, 5
      %v747 = vrot.slane %v746, 4
      %v748 = vrot.slane %v313, 5
      %v749 = vsel %vm745, %v747, %v748
      %v750 = vrot.slane %v720, 5
      %v751 = vrot.slane %v750, 4
      %v752 = vrot.slane %v314, 5
      %v753 = vsel %vm745, %v751, %v752
      %v754 = vrot.slane %v721, 5
      %v755 = vrot.slane %v754, 4
      %v756 = vrot.slane %v315, 5
      %v757 = vsel %vm745, %v755, %v756
      %v758 = vrot.slane %v722, 5
      %v759 = vrot.slane %v758, 4
      %v760 = vrot.slane %v316, 5
      %v761 = vsel %vm745, %v759, %v760
      %v762 = vrot.slane %v723, 5
      %v763 = vrot.slane %v762, 4
      %v764 = vrot.slane %v317, 5
      %v765 = vsel %vm745, %v763, %v764
      %v766 = vrot.slane %v724, 5
      %v767 = vrot.slane %v766, 4
      %v768 = vrot.slane %v318, 5
      %v769 = vsel %vm745, %v767, %v768
      %v770 = vrot.slane %v725, 5
      %v771 = vrot.slane %v770, 4
      %v772 = vrot.slane %v319, 5
      %v773 = vsel %vm745, %v771, %v772
      %v774 = vrot.slane %v726, 5
      %v775 = vrot.slane %v774, 4
      %v776 = vrot.slane %v320, 5
      %v777 = vsel %vm745, %v775, %v776
      %s778 = scalar_lea.vmem %s1, 128
      %v779 = vld [vmem:[%s778] sm:$0xf]
      %v780 = vld [vmem:[%s778 + $0x4] sm:$0xf]
      %v781 = vld [vmem:[%s778 + $0x8] sm:$0xf]
      %v782 = vld [vmem:[%s778 + $0xc] sm:$0xf]
      %v783 = vld [vmem:[%s778 + $0x10] sm:$0xf]
      %v784 = vld [vmem:[%s778 + $0x14] sm:$0xf]
      %v785 = vld [vmem:[%s778 + $0x18] sm:$0xf]
      %v786 = vld [vmem:[%s778 + $0x1c] sm:$0xf]
      %v787 = vld [vmem:[%s778 + $0x20] sm:$0xf]
      %v788 = vld [vmem:[%s778 + $0x24] sm:$0xf]
      %v789 = vld [vmem:[%s778 + $0x28] sm:$0xf]
      %v790 = vld [vmem:[%s778 + $0x2c] sm:$0xf]
      %v791 = vld [vmem:[%s778 + $0x30] sm:$0xf]
      %v792 = vld [vmem:[%s778 + $0x34] sm:$0xf]
      %v793 = vld [vmem:[%s778 + $0x38] sm:$0xf]
      %v794 = vld [vmem:[%s778 + $0x3c] sm:$0xf]
      %v795 = vunpack.c.l.b16 %v749
      %v796 = vunpack.c.l.b16 %v753
      %v797 = vunpack.c.l.b16 %v757
      %v798 = vunpack.c.l.b16 %v761
      %v799 = vunpack.c.l.b16 %v765
      %v800 = vunpack.c.l.b16 %v769
      %v801 = vunpack.c.l.b16 %v773
      %v802 = vunpack.c.l.b16 %v777
      %v803 = vpack.c.b16 %v796, %v795
      %v804 = vpack.c.b16 %v798, %v797
      %v805 = vpack.c.b16 %v800, %v799
      %v806 = vpack.c.b16 %v802, %v801
      %v827 = vunpack.c.l.b16 %v779
      %v828 = vunpack.c.l.b16 %v780
      %v829 = vunpack.c.l.b16 %v781
      %v830 = vunpack.c.l.b16 %v782
      %v831 = vunpack.c.l.b16 %v783
      %v832 = vunpack.c.l.b16 %v784
      %v833 = vunpack.c.l.b16 %v785
      %v834 = vunpack.c.l.b16 %v786
      %v835 = vunpack.c.l.b16 %v787
      %v836 = vunpack.c.l.b16 %v788
      %v837 = vunpack.c.l.b16 %v789
      %v838 = vunpack.c.l.b16 %v790
      %v839 = vunpack.c.l.b16 %v791
      %v840 = vunpack.c.l.b16 %v792
      %v841 = vunpack.c.l.b16 %v793
      %v842 = vunpack.c.l.b16 %v794
      %v843 = vpack.c.b16 %v828, %v827
      %v844 = vpack.c.b16 %v830, %v829
      %v845 = vpack.c.b16 %v832, %v831
      %v846 = vpack.c.b16 %v834, %v833
      %v847 = vpack.c.b16 %v836, %v835
      %v848 = vpack.c.b16 %v838, %v837
      %v849 = vpack.c.b16 %v840, %v839
      %v850 = vpack.c.b16 %v842, %v841
      %859 = vmatprep.subr.bf16.mxu0 0
      %860 = vmatpush1.bf16.msra.mxu0 %v843
      %861 = vmatprep.subr.bf16.mxu0 0
      %862 = vmatpush1.bf16.msra.mxu0 %v844
      %863 = vmatprep.subr.bf16.mxu0 0
      %864 = vmatpush1.bf16.msra.mxu0 %v845
      %865 = vmatprep.subr.bf16.mxu0 0
      %866 = vmatpush1.bf16.msra.mxu0 %v846
      %867 = vmatprep.subr.bf16.mxu0 0
      %868 = vmatpush1.bf16.msra.mxu0 %v847
      %869 = vmatprep.subr.bf16.mxu0 0
      %870 = vmatpush1.bf16.msra.mxu0 %v848
      %871 = vmatprep.subr.bf16.mxu0 0
      %872 = vmatpush1.bf16.msra.mxu0 %v849
      %873 = vmatprep.subr.bf16.mxu0 0
      %874 = vmatpush1.bf16.msra.mxu0 %v850
      %875 = vmatprep.subr.bf16.mxu0 0
      %876 = vmatpush1.bf16.msra.mxu0 0
      %877 = vmatprep.subr.bf16.mxu0 0
      %878 = vmatpush1.bf16.msra.mxu0 0
      %879 = vmatprep.subr.bf16.mxu0 0
      %880 = vmatpush1.bf16.msra.mxu0 0
      %881 = vmatprep.subr.bf16.mxu0 0
      %882 = vmatpush1.bf16.msra.mxu0 0
      %883 = vmatprep.subr.bf16.mxu0 0
      %884 = vmatpush1.bf16.msra.mxu0 0
      %885 = vmatprep.subr.bf16.mxu0 0
      %886 = vmatpush1.bf16.msra.mxu0 0
      %887 = vmatprep.subr.bf16.mxu0 0
      %888 = vmatpush1.bf16.msra.mxu0 0
      %889 = vmatprep.subr.bf16.mxu0 0
      %890 = vmatpush1.bf16.msra.mxu0 0
      %891 = vmatprep.mubr.bf16.mxu0 0
      %892 = vmatmul.mubr.bf16.gmra.mrb[0].mxu0 %v803
      %v893 = vpop.f32.mrb[0].mxu0
      %v894 = vadd.f32 0.0, %v893
      %v895 = vpop.f32.mrb[0].mxu0
      %v896 = vpop.f32.mrb[0].mxu0
      %v897 = vadd.f32 0.0, %v896
      %v898 = vpop.f32.mrb[0].mxu0
      %899 = vmatprep.mubr.bf16.mxu0 0
      %900 = vmatmul.mubr.bf16.gmra.mrb[0].mxu0 %v804
      %v901 = vpop.f32.mrb[0].mxu0
      %v902 = vadd.f32 0.0, %v901
      %v903 = vpop.f32.mrb[0].mxu0
      %v904 = vpop.f32.mrb[0].mxu0
      %v905 = vadd.f32 0.0, %v904
      %v906 = vpop.f32.mrb[0].mxu0
      %907 = vmatprep.mubr.bf16.mxu0 0
      %908 = vmatmul.mubr.bf16.gmra.mrb[0].mxu0 %v805
      %v909 = vpop.f32.mrb[0].mxu0
      %v910 = vadd.f32 0.0, %v909
      %v911 = vpop.f32.mrb[0].mxu0
      %v912 = vpop.f32.mrb[0].mxu0
      %v913 = vadd.f32 0.0, %v912
      %v914 = vpop.f32.mrb[0].mxu0
      %915 = vmatprep.mubr.bf16.mxu0 0
      %916 = vmatmul.mubr.bf16.gmra.mrb[0].mxu0 %v806
      %v917 = vpop.f32.mrb[0].mxu0
      %v918 = vadd.f32 0.0, %v917
      %v919 = vpop.f32.mrb[0].mxu0
      %v920 = vpop.f32.mrb[0].mxu0
      %v921 = vadd.f32 0.0, %v920
      %v922 = vpop.f32.mrb[0].mxu0
      %923 = vdwg.mxu0
      %v924 = vadd.f32 %v689, %v894
      %v925 = vadd.f32 %v692, %v897
      %v926 = vadd.f32 %v697, %v902
      %v927 = vadd.f32 %v700, %v905
      %v928 = vadd.f32 %v705, %v910
      %v929 = vadd.f32 %v708, %v913
      %v930 = vadd.f32 %v713, %v918
      %v931 = vadd.f32 %v716, %v921
      %s932 = sadd.s32 %s285, 1
      %s933 = smul.u32 %s932, 2
      %s934 = smul.addr %s933, 4
      %s935 = scalar_lea.vmem %s263, %s934
      %v936 = vld [vmem:[%s935] sm:$0xf]
      %v937 = vld [vmem:[%s935 + $0x8] sm:$0xf]
      %v938 = vld [vmem:[%s935 + $0x10] sm:$0xf]
      %v939 = vld [vmem:[%s935 + $0x18] sm:$0xf]
      %v940 = vld [vmem:[%s935 + $0x20] sm:$0xf]
      %v941 = vld [vmem:[%s935 + $0x28] sm:$0xf]
      %v942 = vld [vmem:[%s935 + $0x30] sm:$0xf]
      %v943 = vld [vmem:[%s935 + $0x38] sm:$0xf]
      %s944 = scalar_lea.vmem %s1, 192
      %v945 = vld [vmem:[%s944] sm:$0xf]
      %v946 = vld [vmem:[%s944 + $0x4] sm:$0xf]
      %v947 = vld [vmem:[%s944 + $0x8] sm:$0xf]
      %v948 = vld [vmem:[%s944 + $0xc] sm:$0xf]
      %v949 = vld [vmem:[%s944 + $0x10] sm:$0xf]
      %v950 = vld [vmem:[%s944 + $0x14] sm:$0xf]
      %v951 = vld [vmem:[%s944 + $0x18] sm:$0xf]
      %v952 = vld [vmem:[%s944 + $0x1c] sm:$0xf]
      %v953 = vld [vmem:[%s944 + $0x20] sm:$0xf]
      %v954 = vld [vmem:[%s944 + $0x24] sm:$0xf]
      %v955 = vld [vmem:[%s944 + $0x28] sm:$0xf]
      %v956 = vld [vmem:[%s944 + $0x2c] sm:$0xf]
      %v957 = vld [vmem:[%s944 + $0x30] sm:$0xf]
      %v958 = vld [vmem:[%s944 + $0x34] sm:$0xf]
      %v959 = vld [vmem:[%s944 + $0x38] sm:$0xf]
      %v960 = vld [vmem:[%s944 + $0x3c] sm:$0xf]
      %v969 = vunpack.c.l.b16 %v936
      %v970 = vunpack.c.l.b16 %v937
      %v971 = vunpack.c.l.b16 %v938
      %v972 = vunpack.c.l.b16 %v939
      %v973 = vunpack.c.l.b16 %v940
      %v974 = vunpack.c.l.b16 %v941
      %v975 = vunpack.c.l.b16 %v942
      %v976 = vunpack.c.l.b16 %v943
      %v977 = vpack.c.b16 %v970, %v969
      %v978 = vpack.c.b16 %v972, %v971
      %v979 = vpack.c.b16 %v974, %v973
      %v980 = vpack.c.b16 %v976, %v975
      %v1001 = vunpack.c.l.b16 %v945
      %v1002 = vunpack.c.l.b16 %v946
      %v1003 = vunpack.c.l.b16 %v947
      %v1004 = vunpack.c.l.b16 %v948
      %v1005 = vunpack.c.l.b16 %v949
      %v1006 = vunpack.c.l.b16 %v950
      %v1007 = vunpack.c.l.b16 %v951
      %v1008 = vunpack.c.l.b16 %v952
      %v1009 = vunpack.c.l.b16 %v953
      %v1010 = vunpack.c.l.b16 %v954
      %v1011 = vunpack.c.l.b16 %v955
      %v1012 = vunpack.c.l.b16 %v956
      %v1013 = vunpack.c.l.b16 %v957
      %v1014 = vunpack.c.l.b16 %v958
      %v1015 = vunpack.c.l.b16 %v959
      %v1016 = vunpack.c.l.b16 %v960
      %v1017 = vpack.c.b16 %v1002, %v1001
      %v1018 = vpack.c.b16 %v1004, %v1003
      %v1019 = vpack.c.b16 %v1006, %v1005
      %v1020 = vpack.c.b16 %v1008, %v1007
      %v1021 = vpack.c.b16 %v1010, %v1009
      %v1022 = vpack.c.b16 %v1012, %v1011
      %v1023 = vpack.c.b16 %v1014, %v1013
      %v1024 = vpack.c.b16 %v1016, %v1015
      %1033 = vmatprep.subr.bf16.mxu0 0
      %1034 = vmatpush1.bf16.msra.mxu0 %v1017
      %1035 = vmatprep.subr.bf16.mxu0 0
      %1036 = vmatpush1.bf16.msra.mxu0 %v1018
      %1037 = vmatprep.subr.bf16.mxu0 0
      %1038 = vmatpush1.bf16.msra.mxu0 %v1019
      %1039 = vmatprep.subr.bf16.mxu0 0
      %1040 = vmatpush1.bf16.msra.mxu0 %v1020
      %1041 = vmatprep.subr.bf16.mxu0 0
      %1042 = vmatpush1.bf16.msra.mxu0 %v1021
      %1043 = vmatprep.subr.bf16.mxu0 0
      %1044 = vmatpush1.bf16.msra.mxu0 %v1022
      %1045 = vmatprep.subr.bf16.mxu0 0
      %1046 = vmatpush1.bf16.msra.mxu0 %v1023
      %1047 = vmatprep.subr.bf16.mxu0 0
      %1048 = vmatpush1.bf16.msra.mxu0 %v1024
      %1049 = vmatprep.subr.bf16.mxu0 0
      %1050 = vmatpush1.bf16.msra.mxu0 0
      %1051 = vmatprep.subr.bf16.mxu0 0
      %1052 = vmatpush1.bf16.msra.mxu0 0
      %1053 = vmatprep.subr.bf16.mxu0 0
      %1054 = vmatpush1.bf16.msra.mxu0 0
      %1055 = vmatprep.subr.bf16.mxu0 0
      %1056 = vmatpush1.bf16.msra.mxu0 0
      %1057 = vmatprep.subr.bf16.mxu0 0
      %1058 = vmatpush1.bf16.msra.mxu0 0
      %1059 = vmatprep.subr.bf16.mxu0 0
      %1060 = vmatpush1.bf16.msra.mxu0 0
      %1061 = vmatprep.subr.bf16.mxu0 0
      %1062 = vmatpush1.bf16.msra.mxu0 0
      %1063 = vmatprep.subr.bf16.mxu0 0
      %1064 = vmatpush1.bf16.msra.mxu0 0
      %1065 = vmatprep.mubr.bf16.mxu0 0
      %1066 = vmatmul.mubr.bf16.gmra.mrb[0].mxu0 %v977
      %v1067 = vpop.f32.mrb[0].mxu0
      %v1068 = vadd.f32 0.0, %v1067
      %v1069 = vpop.f32.mrb[0].mxu0
      %v1070 = vpop.f32.mrb[0].mxu0
      %v1071 = vadd.f32 0.0, %v1070
      %v1072 = vpop.f32.mrb[0].mxu0
      %1073 = vmatprep.mubr.bf16.mxu0 0
      %1074 = vmatmul.mubr.bf16.gmra.mrb[0].mxu0 %v978
      %v1075 = vpop.f32.mrb[0].mxu0
      %v1076 = vadd.f32 0.0, %v1075
      %v1077 = vpop.f32.mrb[0].mxu0
      %v1078 = vpop.f32.mrb[0].mxu0
      %v1079 = vadd.f32 0.0, %v1078
      %v1080 = vpop.f32.mrb[0].mxu0
      %1081 = vmatprep.mubr.bf16.mxu0 0
      %1082 = vmatmul.mubr.bf16.gmra.mrb[0].mxu0 %v979
      %v1083 = vpop.f32.mrb[0].mxu0
      %v1084 = vadd.f32 0.0, %v1083
      %v1085 = vpop.f32.mrb[0].mxu0
      %v1086 = vpop.f32.mrb[0].mxu0
      %v1087 = vadd.f32 0.0, %v1086
      %v1088 = vpop.f32.mrb[0].mxu0
      %1089 = vmatprep.mubr.bf16.mxu0 0
      %1090 = vmatmul.mubr.bf16.gmra.mrb[0].mxu0 %v980
      %v1091 = vpop.f32.mrb[0].mxu0
      %v1092 = vadd.f32 0.0, %v1091
      %v1093 = vpop.f32.mrb[0].mxu0
      %v1094 = vpop.f32.mrb[0].mxu0
      %v1095 = vadd.f32 0.0, %v1094
      %v1096 = vpop.f32.mrb[0].mxu0
      %1097 = vdwg.mxu0
      %v1098 = vadd.f32 %v924, %v1068
      %v1099 = vadd.f32 %v925, %v1071
      %v1100 = vadd.f32 %v926, %v1076
      %v1101 = vadd.f32 %v927, %v1079
      %v1102 = vadd.f32 %v928, %v1084
      %v1103 = vadd.f32 %v929, %v1087
      %v1104 = vadd.f32 %v930, %v1092
      %v1105 = vadd.f32 %v931, %v1095
      %v1106 = vld [vmem:[%s935] sm:$0xf]
      %v1107 = vld [vmem:[%s935 + $0x4] sm:$0x1]
      %v1108 = vld [vmem:[%s935 + $0x8] sm:$0xf]
      %v1109 = vld [vmem:[%s935 + $0xc] sm:$0x1]
      %v1110 = vld [vmem:[%s935 + $0x10] sm:$0xf]
      %v1111 = vld [vmem:[%s935 + $0x14] sm:$0x1]
      %v1112 = vld [vmem:[%s935 + $0x18] sm:$0xf]
      %v1113 = vld [vmem:[%s935 + $0x1c] sm:$0x1]
      %v1114 = vld [vmem:[%s935 + $0x20] sm:$0xf]
      %v1115 = vld [vmem:[%s935 + $0x24] sm:$0x1]
      %v1116 = vld [vmem:[%s935 + $0x28] sm:$0xf]
      %v1117 = vld [vmem:[%s935 + $0x2c] sm:$0x1]
      %v1118 = vld [vmem:[%s935 + $0x30] sm:$0xf]
      %v1119 = vld [vmem:[%s935 + $0x34] sm:$0x1]
      %v1120 = vld [vmem:[%s935 + $0x38] sm:$0xf]
      %v1121 = vld [vmem:[%s935 + $0x3c] sm:$0x1]
      %v1123 = vshrl.u32 %v1106, 16
      %v1125 = vrot.slane %v1123, 4
      %v1126 = vshll.u32 %v1106, 16
      %v1128 = vrot.slane %v1126, 5
      %v1129 = vor.u32 %v1125, %v1128
      %v1130 = vrot.slane %v1129, 4
      %v1132 = vshll.u32 %v1107, 16
      %v1134 = vrot.slane %v1132, 5
      %v1135 = vsel %vm323, %v1130, %v1134
      %v1137 = vshrl.u32 %v1108, 16
      %v1139 = vrot.slane %v1137, 4
      %v1140 = vshll.u32 %v1108, 16
      %v1142 = vrot.slane %v1140, 5
      %v1143 = vor.u32 %v1139, %v1142
      %v1144 = vrot.slane %v1143, 4
      %v1146 = vshll.u32 %v1109, 16
      %v1148 = vrot.slane %v1146, 5
      %v1149 = vsel %vm323, %v1144, %v1148
      %v1151 = vshrl.u32 %v1110, 16
      %v1153 = vrot.slane %v1151, 4
      %v1154 = vshll.u32 %v1110, 16
      %v1156 = vrot.slane %v1154, 5
      %v1157 = vor.u32 %v1153, %v1156
      %v1158 = vrot.slane %v1157, 4
      %v1160 = vshll.u32 %v1111, 16
      %v1162 = vrot.slane %v1160, 5
      %v1163 = vsel %vm323, %v1158, %v1162
      %v1165 = vshrl.u32 %v1112, 16
      %v1167 = vrot.slane %v1165, 4
      %v1168 = vshll.u32 %v1112, 16
      %v1170 = vrot.slane %v1168, 5
      %v1171 = vor.u32 %v1167, %v1170
      %v1172 = vrot.slane %v1171, 4
      %v1174 = vshll.u32 %v1113, 16
      %v1176 = vrot.slane %v1174, 5
      %v1177 = vsel %vm323, %v1172, %v1176
      %v1179 = vshrl.u32 %v1114, 16
      %v1181 = vrot.slane %v1179, 4
      %v1182 = vshll.u32 %v1114, 16
      %v1184 = vrot.slane %v1182, 5
      %v1185 = vor.u32 %v1181, %v1184
      %v1186 = vrot.slane %v1185, 4
      %v1188 = vshll.u32 %v1115, 16
      %v1190 = vrot.slane %v1188, 5
      %v1191 = vsel %vm323, %v1186, %v1190
      %v1193 = vshrl.u32 %v1116, 16
      %v1195 = vrot.slane %v1193, 4
      %v1196 = vshll.u32 %v1116, 16
      %v1198 = vrot.slane %v1196, 5
      %v1199 = vor.u32 %v1195, %v1198
      %v1200 = vrot.slane %v1199, 4
      %v1202 = vshll.u32 %v1117, 16
      %v1204 = vrot.slane %v1202, 5
      %v1205 = vsel %vm323, %v1200, %v1204
      %v1207 = vshrl.u32 %v1118, 16
      %v1209 = vrot.slane %v1207, 4
      %v1210 = vshll.u32 %v1118, 16
      %v1212 = vrot.slane %v1210, 5
      %v1213 = vor.u32 %v1209, %v1212
      %v1214 = vrot.slane %v1213, 4
      %v1216 = vshll.u32 %v1119, 16
      %v1218 = vrot.slane %v1216, 5
      %v1219 = vsel %vm323, %v1214, %v1218
      %v1221 = vshrl.u32 %v1120, 16
      %v1223 = vrot.slane %v1221, 4
      %v1224 = vshll.u32 %v1120, 16
      %v1226 = vrot.slane %v1224, 5
      %v1227 = vor.u32 %v1223, %v1226
      %v1228 = vrot.slane %v1227, 4
      %v1230 = vshll.u32 %v1121, 16
      %v1232 = vrot.slane %v1230, 5
      %v1233 = vsel %vm323, %v1228, %v1232
      %s1234 = scalar_lea.vmem %s1, 256
      %v1235 = vld [vmem:[%s1234] sm:$0xf]
      %v1236 = vld [vmem:[%s1234 + $0x4] sm:$0xf]
      %v1237 = vld [vmem:[%s1234 + $0x8] sm:$0xf]
      %v1238 = vld [vmem:[%s1234 + $0xc] sm:$0xf]
      %v1239 = vld [vmem:[%s1234 + $0x10] sm:$0xf]
      %v1240 = vld [vmem:[%s1234 + $0x14] sm:$0xf]
      %v1241 = vld [vmem:[%s1234 + $0x18] sm:$0xf]
      %v1242 = vld [vmem:[%s1234 + $0x1c] sm:$0xf]
      %v1243 = vld [vmem:[%s1234 + $0x20] sm:$0xf]
      %v1244 = vld [vmem:[%s1234 + $0x24] sm:$0xf]
      %v1245 = vld [vmem:[%s1234 + $0x28] sm:$0xf]
      %v1246 = vld [vmem:[%s1234 + $0x2c] sm:$0xf]
      %v1247 = vld [vmem:[%s1234 + $0x30] sm:$0xf]
      %v1248 = vld [vmem:[%s1234 + $0x34] sm:$0xf]
      %v1249 = vld [vmem:[%s1234 + $0x38] sm:$0xf]
      %v1250 = vld [vmem:[%s1234 + $0x3c] sm:$0xf]
      %v1251 = vunpack.c.l.b16 %v1135
      %v1252 = vunpack.c.l.b16 %v1149
      %v1253 = vunpack.c.l.b16 %v1163
      %v1254 = vunpack.c.l.b16 %v1177
      %v1255 = vunpack.c.l.b16 %v1191
      %v1256 = vunpack.c.l.b16 %v1205
      %v1257 = vunpack.c.l.b16 %v1219
      %v1258 = vunpack.c.l.b16 %v1233
      %v1259 = vpack.c.b16 %v1252, %v1251
      %v1260 = vpack.c.b16 %v1254, %v1253
      %v1261 = vpack.c.b16 %v1256, %v1255
      %v1262 = vpack.c.b16 %v1258, %v1257
      %v1283 = vunpack.c.l.b16 %v1235
      %v1284 = vunpack.c.l.b16 %v1236
      %v1285 = vunpack.c.l.b16 %v1237
      %v1286 = vunpack.c.l.b16 %v1238
      %v1287 = vunpack.c.l.b16 %v1239
      %v1288 = vunpack.c.l.b16 %v1240
      %v1289 = vunpack.c.l.b16 %v1241
      %v1290 = vunpack.c.l.b16 %v1242
      %v1291 = vunpack.c.l.b16 %v1243
      %v1292 = vunpack.c.l.b16 %v1244
      %v1293 = vunpack.c.l.b16 %v1245
      %v1294 = vunpack.c.l.b16 %v1246
      %v1295 = vunpack.c.l.b16 %v1247
      %v1296 = vunpack.c.l.b16 %v1248
      %v1297 = vunpack.c.l.b16 %v1249
      %v1298 = vunpack.c.l.b16 %v1250
      %v1299 = vpack.c.b16 %v1284, %v1283
      %v1300 = vpack.c.b16 %v1286, %v1285
      %v1301 = vpack.c.b16 %v1288, %v1287
      %v1302 = vpack.c.b16 %v1290, %v1289
      %v1303 = vpack.c.b16 %v1292, %v1291
      %v1304 = vpack.c.b16 %v1294, %v1293
      %v1305 = vpack.c.b16 %v1296, %v1295
      %v1306 = vpack.c.b16 %v1298, %v1297
      %1315 = vmatprep.subr.bf16.mxu0 0
      %1316 = vmatpush1.bf16.msra.mxu0 %v1299
      %1317 = vmatprep.subr.bf16.mxu0 0
      %1318 = vmatpush1.bf16.msra.mxu0 %v1300
      %1319 = vmatprep.subr.bf16.mxu0 0
      %1320 = vmatpush1.bf16.msra.mxu0 %v1301
      %1321 = vmatprep.subr.bf16.mxu0 0
      %1322 = vmatpush1.bf16.msra.mxu0 %v1302
      %1323 = vmatprep.subr.bf16.mxu0 0
      %1324 = vmatpush1.bf16.msra.mxu0 %v1303
      %1325 = vmatprep.subr.bf16.mxu0 0
      %1326 = vmatpush1.bf16.msra.mxu0 %v1304
      %1327 = vmatprep.subr.bf16.mxu0 0
      %1328 = vmatpush1.bf16.msra.mxu0 %v1305
      %1329 = vmatprep.subr.bf16.mxu0 0
      %1330 = vmatpush1.bf16.msra.mxu0 %v1306
      %1331 = vmatprep.subr.bf16.mxu0 0
      %1332 = vmatpush1.bf16.msra.mxu0 0
      %1333 = vmatprep.subr.bf16.mxu0 0
      %1334 = vmatpush1.bf16.msra.mxu0 0
      %1335 = vmatprep.subr.bf16.mxu0 0
      %1336 = vmatpush1.bf16.msra.mxu0 0
      %1337 = vmatprep.subr.bf16.mxu0 0
      %1338 = vmatpush1.bf16.msra.mxu0 0
      %1339 = vmatprep.subr.bf16.mxu0 0
      %1340 = vmatpush1.bf16.msra.mxu0 0
      %1341 = vmatprep.subr.bf16.mxu0 0
      %1342 = vmatpush1.bf16.msra.mxu0 0
      %1343 = vmatprep.subr.bf16.mxu0 0
      %1344 = vmatpush1.bf16.msra.mxu0 0
      %1345 = vmatprep.subr.bf16.mxu0 0
      %1346 = vmatpush1.bf16.msra.mxu0 0
      %1347 = vmatprep.mubr.bf16.mxu0 0
      %1348 = vmatmul.mubr.bf16.gmra.mrb[0].mxu0 %v1259
      %v1349 = vpop.f32.mrb[0].mxu0
      %v1350 = vadd.f32 0.0, %v1349
      %v1351 = vpop.f32.mrb[0].mxu0
      %v1352 = vpop.f32.mrb[0].mxu0
      %v1353 = vadd.f32 0.0, %v1352
      %v1354 = vpop.f32.mrb[0].mxu0
      %1355 = vmatprep.mubr.bf16.mxu0 0
      %1356 = vmatmul.mubr.bf16.gmra.mrb[0].mxu0 %v1260
      %v1357 = vpop.f32.mrb[0].mxu0
      %v1358 = vadd.f32 0.0, %v1357
      %v1359 = vpop.f32.mrb[0].mxu0
      %v1360 = vpop.f32.mrb[0].mxu0
      %v1361 = vadd.f32 0.0, %v1360
      %v1362 = vpop.f32.mrb[0].mxu0
      %1363 = vmatprep.mubr.bf16.mxu0 0
      %1364 = vmatmul.mubr.bf16.gmra.mrb[0].mxu0 %v1261
      %v1365 = vpop.f32.mrb[0].mxu0
      %v1366 = vadd.f32 0.0, %v1365
      %v1367 = vpop.f32.mrb[0].mxu0
      %v1368 = vpop.f32.mrb[0].mxu0
      %v1369 = vadd.f32 0.0, %v1368
      %v1370 = vpop.f32.mrb[0].mxu0
      %1371 = vmatprep.mubr.bf16.mxu0 0
      %1372 = vmatmul.mubr.bf16.gmra.mrb[0].mxu0 %v1262
      %v1373 = vpop.f32.mrb[0].mxu0
      %v1374 = vadd.f32 0.0, %v1373
      %v1375 = vpop.f32.mrb[0].mxu0
      %v1376 = vpop.f32.mrb[0].mxu0
      %v1377 = vadd.f32 0.0, %v1376
      %v1378 = vpop.f32.mrb[0].mxu0
      %1379 = vdwg.mxu0
      %v1380 = vadd.f32 %v1098, %v1350
      %v1381 = vadd.f32 %v1099, %v1353
      %v1382 = vadd.f32 %v1100, %v1358
      %v1383 = vadd.f32 %v1101, %v1361
      %v1384 = vadd.f32 %v1102, %v1366
      %v1385 = vadd.f32 %v1103, %v1369
      %v1386 = vadd.f32 %v1104, %v1374
      %v1387 = vadd.f32 %v1105, %v1377
      %v1388 = vld [vmem:[%s935] sm:$0xe]
      %v1389 = vld [vmem:[%s935 + $0x8] sm:$0xe]
      %v1390 = vld [vmem:[%s935 + $0x10] sm:$0xe]
      %v1391 = vld [vmem:[%s935 + $0x18] sm:$0xe]
      %v1392 = vld [vmem:[%s935 + $0x20] sm:$0xe]
      %v1393 = vld [vmem:[%s935 + $0x28] sm:$0xe]
      %v1394 = vld [vmem:[%s935 + $0x30] sm:$0xe]
      %v1395 = vld [vmem:[%s935 + $0x38] sm:$0xe]
      %v1412 = vrot.slane %v1388, 5
      %v1413 = vrot.slane %v1412, 4
      %v1414 = vrot.slane %v1107, 5
      %v1415 = vsel %vm745, %v1413, %v1414
      %v1416 = vrot.slane %v1389, 5
      %v1417 = vrot.slane %v1416, 4
      %v1418 = vrot.slane %v1109, 5
      %v1419 = vsel %vm745, %v1417, %v1418
      %v1420 = vrot.slane %v1390, 5
      %v1421 = vrot.slane %v1420, 4
      %v1422 = vrot.slane %v1111, 5
      %v1423 = vsel %vm745, %v1421, %v1422
      %v1424 = vrot.slane %v1391, 5
      %v1425 = vrot.slane %v1424, 4
      %v1426 = vrot.slane %v1113, 5
      %v1427 = vsel %vm745, %v1425, %v1426
      %v1428 = vrot.slane %v1392, 5
      %v1429 = vrot.slane %v1428, 4
      %v1430 = vrot.slane %v1115, 5
      %v1431 = vsel %vm745, %v1429, %v1430
      %v1432 = vrot.slane %v1393, 5
      %v1433 = vrot.slane %v1432, 4
      %v1434 = vrot.slane %v1117, 5
      %v1435 = vsel %vm745, %v1433, %v1434
      %v1436 = vrot.slane %v1394, 5
      %v1437 = vrot.slane %v1436, 4
      %v1438 = vrot.slane %v1119, 5
      %v1439 = vsel %vm745, %v1437, %v1438
      %v1440 = vrot.slane %v1395, 5
      %v1441 = vrot.slane %v1440, 4
      %v1442 = vrot.slane %v1121, 5
      %v1443 = vsel %vm745, %v1441, %v1442
      %s1444 = scalar_lea.vmem %s1, 320
      %v1445 = vld [vmem:[%s1444] sm:$0xf]
      %v1446 = vld [vmem:[%s1444 + $0x4] sm:$0xf]
      %v1447 = vld [vmem:[%s1444 + $0x8] sm:$0xf]
      %v1448 = vld [vmem:[%s1444 + $0xc] sm:$0xf]
      %v1449 = vld [vmem:[%s1444 + $0x10] sm:$0xf]
      %v1450 = vld [vmem:[%s1444 + $0x14] sm:$0xf]
      %v1451 = vld [vmem:[%s1444 + $0x18] sm:$0xf]
      %v1452 = vld [vmem:[%s1444 + $0x1c] sm:$0xf]
      %v1453 = vld [vmem:[%s1444 + $0x20] sm:$0xf]
      %v1454 = vld [vmem:[%s1444 + $0x24] sm:$0xf]
      %v1455 = vld [vmem:[%s1444 + $0x28] sm:$0xf]
      %v1456 = vld [vmem:[%s1444 + $0x2c] sm:$0xf]
      %v1457 = vld [vmem:[%s1444 + $0x30] sm:$0xf]
      %v1458 = vld [vmem:[%s1444 + $0x34] sm:$0xf]
      %v1459 = vld [vmem:[%s1444 + $0x38] sm:$0xf]
      %v1460 = vld [vmem:[%s1444 + $0x3c] sm:$0xf]
      %v1461 = vunpack.c.l.b16 %v1415
      %v1462 = vunpack.c.l.b16 %v1419
      %v1463 = vunpack.c.l.b16 %v1423
      %v1464 = vunpack.c.l.b16 %v1427
      %v1465 = vunpack.c.l.b16 %v1431
      %v1466 = vunpack.c.l.b16 %v1435
      %v1467 = vunpack.c.l.b16 %v1439
      %v1468 = vunpack.c.l.b16 %v1443
      %v1469 = vpack.c.b16 %v1462, %v1461
      %v1470 = vpack.c.b16 %v1464, %v1463
      %v1471 = vpack.c.b16 %v1466, %v1465
      %v1472 = vpack.c.b16 %v1468, %v1467
      %v1493 = vunpack.c.l.b16 %v1445
      %v1494 = vunpack.c.l.b16 %v1446
      %v1495 = vunpack.c.l.b16 %v1447
      %v1496 = vunpack.c.l.b16 %v1448
      %v1497 = vunpack.c.l.b16 %v1449
      %v1498 = vunpack.c.l.b16 %v1450
      %v1499 = vunpack.c.l.b16 %v1451
      %v1500 = vunpack.c.l.b16 %v1452
      %v1501 = vunpack.c.l.b16 %v1453
      %v1502 = vunpack.c.l.b16 %v1454
      %v1503 = vunpack.c.l.b16 %v1455
      %v1504 = vunpack.c.l.b16 %v1456
      %v1505 = vunpack.c.l.b16 %v1457
      %v1506 = vunpack.c.l.b16 %v1458
      %v1507 = vunpack.c.l.b16 %v1459
      %v1508 = vunpack.c.l.b16 %v1460
      %v1509 = vpack.c.b16 %v1494, %v1493
      %v1510 = vpack.c.b16 %v1496, %v1495
      %v1511 = vpack.c.b16 %v1498, %v1497
      %v1512 = vpack.c.b16 %v1500, %v1499
      %v1513 = vpack.c.b16 %v1502, %v1501
      %v1514 = vpack.c.b16 %v1504, %v1503
      %v1515 = vpack.c.b16 %v1506, %v1505
      %v1516 = vpack.c.b16 %v1508, %v1507
      %1525 = vmatprep.subr.bf16.mxu0 0
      %1526 = vmatpush1.bf16.msra.mxu0 %v1509
      %1527 = vmatprep.subr.bf16.mxu0 0
      %1528 = vmatpush1.bf16.msra.mxu0 %v1510
      %1529 = vmatprep.subr.bf16.mxu0 0
      %1530 = vmatpush1.bf16.msra.mxu0 %v1511
      %1531 = vmatprep.subr.bf16.mxu0 0
      %1532 = vmatpush1.bf16.msra.mxu0 %v1512
      %1533 = vmatprep.subr.bf16.mxu0 0
      %1534 = vmatpush1.bf16.msra.mxu0 %v1513
      %1535 = vmatprep.subr.bf16.mxu0 0
      %1536 = vmatpush1.bf16.msra.mxu0 %v1514
      %1537 = vmatprep.subr.bf16.mxu0 0
      %1538 = vmatpush1.bf16.msra.mxu0 %v1515
      %1539 = vmatprep.subr.bf16.mxu0 0
      %1540 = vmatpush1.bf16.msra.mxu0 %v1516
      %1541 = vmatprep.subr.bf16.mxu0 0
      %1542 = vmatpush1.bf16.msra.mxu0 0
      %1543 = vmatprep.subr.bf16.mxu0 0
      %1544 = vmatpush1.bf16.msra.mxu0 0
      %1545 = vmatprep.subr.bf16.mxu0 0
      %1546 = vmatpush1.bf16.msra.mxu0 0
      %1547 = vmatprep.subr.bf16.mxu0 0
      %1548 = vmatpush1.bf16.msra.mxu0 0
      %1549 = vmatprep.subr.bf16.mxu0 0
      %1550 = vmatpush1.bf16.msra.mxu0 0
      %1551 = vmatprep.subr.bf16.mxu0 0
      %1552 = vmatpush1.bf16.msra.mxu0 0
      %1553 = vmatprep.subr.bf16.mxu0 0
      %1554 = vmatpush1.bf16.msra.mxu0 0
      %1555 = vmatprep.subr.bf16.mxu0 0
      %1556 = vmatpush1.bf16.msra.mxu0 0
      %1557 = vmatprep.mubr.bf16.mxu0 0
      %1558 = vmatmul.mubr.bf16.gmra.mrb[0].mxu0 %v1469
      %v1559 = vpop.f32.mrb[0].mxu0
      %v1560 = vadd.f32 0.0, %v1559
      %v1561 = vpop.f32.mrb[0].mxu0
      %v1562 = vpop.f32.mrb[0].mxu0
      %v1563 = vadd.f32 0.0, %v1562
      %v1564 = vpop.f32.mrb[0].mxu0
      %1565 = vmatprep.mubr.bf16.mxu0 0
      %1566 = vmatmul.mubr.bf16.gmra.mrb[0].mxu0 %v1470
      %v1567 = vpop.f32.mrb[0].mxu0
      %v1568 = vadd.f32 0.0, %v1567
      %v1569 = vpop.f32.mrb[0].mxu0
      %v1570 = vpop.f32.mrb[0].mxu0
      %v1571 = vadd.f32 0.0, %v1570
      %v1572 = vpop.f32.mrb[0].mxu0
      %1573 = vmatprep.mubr.bf16.mxu0 0
      %1574 = vmatmul.mubr.bf16.gmra.mrb[0].mxu0 %v1471
      %v1575 = vpop.f32.mrb[0].mxu0
      %v1576 = vadd.f32 0.0, %v1575
      %v1577 = vpop.f32.mrb[0].mxu0
      %v1578 = vpop.f32.mrb[0].mxu0
      %v1579 = vadd.f32 0.0, %v1578
      %v1580 = vpop.f32.mrb[0].mxu0
      %1581 = vmatprep.mubr.bf16.mxu0 0
      %1582 = vmatmul.mubr.bf16.gmra.mrb[0].mxu0 %v1472
      %v1583 = vpop.f32.mrb[0].mxu0
      %v1584 = vadd.f32 0.0, %v1583
      %v1585 = vpop.f32.mrb[0].mxu0
      %v1586 = vpop.f32.mrb[0].mxu0
      %v1587 = vadd.f32 0.0, %v1586
      %v1588 = vpop.f32.mrb[0].mxu0
      %1589 = vdwg.mxu0
      %v1590 = vadd.f32 %v1380, %v1560
      %v1591 = vadd.f32 %v1381, %v1563
      %v1592 = vadd.f32 %v1382, %v1568
      %v1593 = vadd.f32 %v1383, %v1571
      %v1594 = vadd.f32 %v1384, %v1576
      %v1595 = vadd.f32 %v1385, %v1579
      %v1596 = vadd.f32 %v1386, %v1584
      %v1597 = vadd.f32 %v1387, %v1587
      %s1598 = sadd.s32 %s285, 2
      %s1599 = smul.u32 %s1598, 2
      %s1600 = smul.addr %s1599, 4
      %s1601 = scalar_lea.vmem %s263, %s1600
      %v1602 = vld [vmem:[%s1601] sm:$0xf]
      %v1603 = vld [vmem:[%s1601 + $0x8] sm:$0xf]
      %v1604 = vld [vmem:[%s1601 + $0x10] sm:$0xf]
      %v1605 = vld [vmem:[%s1601 + $0x18] sm:$0xf]
      %v1606 = vld [vmem:[%s1601 + $0x20] sm:$0xf]
      %v1607 = vld [vmem:[%s1601 + $0x28] sm:$0xf]
      %v1608 = vld [vmem:[%s1601 + $0x30] sm:$0xf]
      %v1609 = vld [vmem:[%s1601 + $0x38] sm:$0xf]
      %s1610 = scalar_lea.vmem %s1, 384
      %v1611 = vld [vmem:[%s1610] sm:$0xf]
      %v1612 = vld [vmem:[%s1610 + $0x4] sm:$0xf]
      %v1613 = vld [vmem:[%s1610 + $0x8] sm:$0xf]
      %v1614 = vld [vmem:[%s1610 + $0xc] sm:$0xf]
      %v1615 = vld [vmem:[%s1610 + $0x10] sm:$0xf]
      %v1616 = vld [vmem:[%s1610 + $0x14] sm:$0xf]
      %v1617 = vld [vmem:[%s1610 + $0x18] sm:$0xf]
      %v1618 = vld [vmem:[%s1610 + $0x1c] sm:$0xf]
      %v1619 = vld [vmem:[%s1610 + $0x20] sm:$0xf]
      %v1620 = vld [vmem:[%s1610 + $0x24] sm:$0xf]
      %v1621 = vld [vmem:[%s1610 + $0x28] sm:$0xf]
      %v1622 = vld [vmem:[%s1610 + $0x2c] sm:$0xf]
      %v1623 = vld [vmem:[%s1610 + $0x30] sm:$0xf]
      %v1624 = vld [vmem:[%s1610 + $0x34] sm:$0xf]
      %v1625 = vld [vmem:[%s1610 + $0x38] sm:$0xf]
      %v1626 = vld [vmem:[%s1610 + $0x3c] sm:$0xf]
      %v1635 = vunpack.c.l.b16 %v1602
      %v1636 = vunpack.c.l.b16 %v1603
      %v1637 = vunpack.c.l.b16 %v1604
      %v1638 = vunpack.c.l.b16 %v1605
      %v1639 = vunpack.c.l.b16 %v1606
      %v1640 = vunpack.c.l.b16 %v1607
      %v1641 = vunpack.c.l.b16 %v1608
      %v1642 = vunpack.c.l.b16 %v1609
      %v1643 = vpack.c.b16 %v1636, %v1635
      %v1644 = vpack.c.b16 %v1638, %v1637
      %v1645 = vpack.c.b16 %v1640, %v1639
      %v1646 = vpack.c.b16 %v1642, %v1641
      %v1667 = vunpack.c.l.b16 %v1611
      %v1668 = vunpack.c.l.b16 %v1612
      %v1669 = vunpack.c.l.b16 %v1613
      %v1670 = vunpack.c.l.b16 %v1614
      %v1671 = vunpack.c.l.b16 %v1615
      %v1672 = vunpack.c.l.b16 %v1616
      %v1673 = vunpack.c.l.b16 %v1617
      %v1674 = vunpack.c.l.b16 %v1618
      %v1675 = vunpack.c.l.b16 %v1619
      %v1676 = vunpack.c.l.b16 %v1620
      %v1677 = vunpack.c.l.b16 %v1621
      %v1678 = vunpack.c.l.b16 %v1622
      %v1679 = vunpack.c.l.b16 %v1623
      %v1680 = vunpack.c.l.b16 %v1624
      %v1681 = vunpack.c.l.b16 %v1625
      %v1682 = vunpack.c.l.b16 %v1626
      %v1683 = vpack.c.b16 %v1668, %v1667
      %v1684 = vpack.c.b16 %v1670, %v1669
      %v1685 = vpack.c.b16 %v1672, %v1671
      %v1686 = vpack.c.b16 %v1674, %v1673
      %v1687 = vpack.c.b16 %v1676, %v1675
      %v1688 = vpack.c.b16 %v1678, %v1677
      %v1689 = vpack.c.b16 %v1680, %v1679
      %v1690 = vpack.c.b16 %v1682, %v1681
      %1699 = vmatprep.subr.bf16.mxu0 0
      %1700 = vmatpush1.bf16.msra.mxu0 %v1683
      %1701 = vmatprep.subr.bf16.mxu0 0
      %1702 = vmatpush1.bf16.msra.mxu0 %v1684
      %1703 = vmatprep.subr.bf16.mxu0 0
      %1704 = vmatpush1.bf16.msra.mxu0 %v1685
      %1705 = vmatprep.subr.bf16.mxu0 0
      %1706 = vmatpush1.bf16.msra.mxu0 %v1686
      %1707 = vmatprep.subr.bf16.mxu0 0
      %1708 = vmatpush1.bf16.msra.mxu0 %v1687
      %1709 = vmatprep.subr.bf16.mxu0 0
      %1710 = vmatpush1.bf16.msra.mxu0 %v1688
      %1711 = vmatprep.subr.bf16.mxu0 0
      %1712 = vmatpush1.bf16.msra.mxu0 %v1689
      %1713 = vmatprep.subr.bf16.mxu0 0
      %1714 = vmatpush1.bf16.msra.mxu0 %v1690
      %1715 = vmatprep.subr.bf16.mxu0 0
      %1716 = vmatpush1.bf16.msra.mxu0 0
      %1717 = vmatprep.subr.bf16.mxu0 0
      %1718 = vmatpush1.bf16.msra.mxu0 0
      %1719 = vmatprep.subr.bf16.mxu0 0
      %1720 = vmatpush1.bf16.msra.mxu0 0
      %1721 = vmatprep.subr.bf16.mxu0 0
      %1722 = vmatpush1.bf16.msra.mxu0 0
      %1723 = vmatprep.subr.bf16.mxu0 0
      %1724 = vmatpush1.bf16.msra.mxu0 0
      %1725 = vmatprep.subr.bf16.mxu0 0
      %1726 = vmatpush1.bf16.msra.mxu0 0
      %1727 = vmatprep.subr.bf16.mxu0 0
      %1728 = vmatpush1.bf16.msra.mxu0 0
      %1729 = vmatprep.subr.bf16.mxu0 0
      %1730 = vmatpush1.bf16.msra.mxu0 0
      %1731 = vmatprep.mubr.bf16.mxu0 0
      %1732 = vmatmul.mubr.bf16.gmra.mrb[0].mxu0 %v1643
      %v1733 = vpop.f32.mrb[0].mxu0
      %v1734 = vadd.f32 0.0, %v1733
      %v1735 = vpop.f32.mrb[0].mxu0
      %v1736 = vpop.f32.mrb[0].mxu0
      %v1737 = vadd.f32 0.0, %v1736
      %v1738 = vpop.f32.mrb[0].mxu0
      %1739 = vmatprep.mubr.bf16.mxu0 0
      %1740 = vmatmul.mubr.bf16.gmra.mrb[0].mxu0 %v1644
      %v1741 = vpop.f32.mrb[0].mxu0
      %v1742 = vadd.f32 0.0, %v1741
      %v1743 = vpop.f32.mrb[0].mxu0
      %v1744 = vpop.f32.mrb[0].mxu0
      %v1745 = vadd.f32 0.0, %v1744
      %v1746 = vpop.f32.mrb[0].mxu0
      %1747 = vmatprep.mubr.bf16.mxu0 0
      %1748 = vmatmul.mubr.bf16.gmra.mrb[0].mxu0 %v1645
      %v1749 = vpop.f32.mrb[0].mxu0
      %v1750 = vadd.f32 0.0, %v1749
      %v1751 = vpop.f32.mrb[0].mxu0
      %v1752 = vpop.f32.mrb[0].mxu0
      %v1753 = vadd.f32 0.0, %v1752
      %v1754 = vpop.f32.mrb[0].mxu0
      %1755 = vmatprep.mubr.bf16.mxu0 0
      %1756 = vmatmul.mubr.bf16.gmra.mrb[0].mxu0 %v1646
      %v1757 = vpop.f32.mrb[0].mxu0
      %v1758 = vadd.f32 0.0, %v1757
      %v1759 = vpop.f32.mrb[0].mxu0
      %v1760 = vpop.f32.mrb[0].mxu0
      %v1761 = vadd.f32 0.0, %v1760
      %v1762 = vpop.f32.mrb[0].mxu0
      %1763 = vdwg.mxu0
      %v1764 = vadd.f32 %v1590, %v1734
      %v1765 = vadd.f32 %v1591, %v1737
      %v1766 = vadd.f32 %v1592, %v1742
      %v1767 = vadd.f32 %v1593, %v1745
      %v1768 = vadd.f32 %v1594, %v1750
      %v1769 = vadd.f32 %v1595, %v1753
      %v1770 = vadd.f32 %v1596, %v1758
      %v1771 = vadd.f32 %v1597, %v1761
      %v1772 = vld [vmem:[%s1601] sm:$0xf]
      %v1773 = vld [vmem:[%s1601 + $0x4] sm:$0x1]
      %v1774 = vld [vmem:[%s1601 + $0x8] sm:$0xf]
      %v1775 = vld [vmem:[%s1601 + $0xc] sm:$0x1]
      %v1776 = vld [vmem:[%s1601 + $0x10] sm:$0xf]
      %v1777 = vld [vmem:[%s1601 + $0x14] sm:$0x1]
      %v1778 = vld [vmem:[%s1601 + $0x18] sm:$0xf]
      %v1779 = vld [vmem:[%s1601 + $0x1c] sm:$0x1]
      %v1780 = vld [vmem:[%s1601 + $0x20] sm:$0xf]
      %v1781 = vld [vmem:[%s1601 + $0x24] sm:$0x1]
      %v1782 = vld [vmem:[%s1601 + $0x28] sm:$0xf]
      %v1783 = vld [vmem:[%s1601 + $0x2c] sm:$0x1]
      %v1784 = vld [vmem:[%s1601 + $0x30] sm:$0xf]
      %v1785 = vld [vmem:[%s1601 + $0x34] sm:$0x1]
      %v1786 = vld [vmem:[%s1601 + $0x38] sm:$0xf]
      %v1787 = vld [vmem:[%s1601 + $0x3c] sm:$0x1]
      %v1789 = vshrl.u32 %v1772, 16
      %v1791 = vrot.slane %v1789, 4
      %v1792 = vshll.u32 %v1772, 16
      %v1794 = vrot.slane %v1792, 5
      %v1795 = vor.u32 %v1791, %v1794
      %v1796 = vrot.slane %v1795, 4
      %v1798 = vshll.u32 %v1773, 16
      %v1800 = vrot.slane %v1798, 5
      %v1801 = vsel %vm323, %v1796, %v1800
      %v1803 = vshrl.u32 %v1774, 16
      %v1805 = vrot.slane %v1803, 4
      %v1806 = vshll.u32 %v1774, 16
      %v1808 = vrot.slane %v1806, 5
      %v1809 = vor.u32 %v1805, %v1808
      %v1810 = vrot.slane %v1809, 4
      %v1812 = vshll.u32 %v1775, 16
      %v1814 = vrot.slane %v1812, 5
      %v1815 = vsel %vm323, %v1810, %v1814
      %v1817 = vshrl.u32 %v1776, 16
      %v1819 = vrot.slane %v1817, 4
      %v1820 = vshll.u32 %v1776, 16
      %v1822 = vrot.slane %v1820, 5
      %v1823 = vor.u32 %v1819, %v1822
      %v1824 = vrot.slane %v1823, 4
      %v1826 = vshll.u32 %v1777, 16
      %v1828 = vrot.slane %v1826, 5
      %v1829 = vsel %vm323, %v1824, %v1828
      %v1831 = vshrl.u32 %v1778, 16
      %v1833 = vrot.slane %v1831, 4
      %v1834 = vshll.u32 %v1778, 16
      %v1836 = vrot.slane %v1834, 5
      %v1837 = vor.u32 %v1833, %v1836
      %v1838 = vrot.slane %v1837, 4
      %v1840 = vshll.u32 %v1779, 16
      %v1842 = vrot.slane %v1840, 5
      %v1843 = vsel %vm323, %v1838, %v1842
      %v1845 = vshrl.u32 %v1780, 16
      %v1847 = vrot.slane %v1845, 4
      %v1848 = vshll.u32 %v1780, 16
      %v1850 = vrot.slane %v1848, 5
      %v1851 = vor.u32 %v1847, %v1850
      %v1852 = vrot.slane %v1851, 4
      %v1854 = vshll.u32 %v1781, 16
      %v1856 = vrot.slane %v1854, 5
      %v1857 = vsel %vm323, %v1852, %v1856
      %v1859 = vshrl.u32 %v1782, 16
      %v1861 = vrot.slane %v1859, 4
      %v1862 = vshll.u32 %v1782, 16
      %v1864 = vrot.slane %v1862, 5
      %v1865 = vor.u32 %v1861, %v1864
      %v1866 = vrot.slane %v1865, 4
      %v1868 = vshll.u32 %v1783, 16
      %v1870 = vrot.slane %v1868, 5
      %v1871 = vsel %vm323, %v1866, %v1870
      %v1873 = vshrl.u32 %v1784, 16
      %v1875 = vrot.slane %v1873, 4
      %v1876 = vshll.u32 %v1784, 16
      %v1878 = vrot.slane %v1876, 5
      %v1879 = vor.u32 %v1875, %v1878
      %v1880 = vrot.slane %v1879, 4
      %v1882 = vshll.u32 %v1785, 16
      %v1884 = vrot.slane %v1882, 5
      %v1885 = vsel %vm323, %v1880, %v1884
      %v1887 = vshrl.u32 %v1786, 16
      %v1889 = vrot.slane %v1887, 4
      %v1890 = vshll.u32 %v1786, 16
      %v1892 = vrot.slane %v1890, 5
      %v1893 = vor.u32 %v1889, %v1892
      %v1894 = vrot.slane %v1893, 4
      %v1896 = vshll.u32 %v1787, 16
      %v1898 = vrot.slane %v1896, 5
      %v1899 = vsel %vm323, %v1894, %v1898
      %s1900 = scalar_lea.vmem %s1, 448
      %v1901 = vld [vmem:[%s1900] sm:$0xf]
      %v1902 = vld [vmem:[%s1900 + $0x4] sm:$0xf]
      %v1903 = vld [vmem:[%s1900 + $0x8] sm:$0xf]
      %v1904 = vld [vmem:[%s1900 + $0xc] sm:$0xf]
      %v1905 = vld [vmem:[%s1900 + $0x10] sm:$0xf]
      %v1906 = vld [vmem:[%s1900 + $0x14] sm:$0xf]
      %v1907 = vld [vmem:[%s1900 + $0x18] sm:$0xf]
      %v1908 = vld [vmem:[%s1900 + $0x1c] sm:$0xf]
      %v1909 = vld [vmem:[%s1900 + $0x20] sm:$0xf]
      %v1910 = vld [vmem:[%s1900 + $0x24] sm:$0xf]
      %v1911 = vld [vmem:[%s1900 + $0x28] sm:$0xf]
      %v1912 = vld [vmem:[%s1900 + $0x2c] sm:$0xf]
      %v1913 = vld [vmem:[%s1900 + $0x30] sm:$0xf]
      %v1914 = vld [vmem:[%s1900 + $0x34] sm:$0xf]
      %v1915 = vld [vmem:[%s1900 + $0x38] sm:$0xf]
      %v1916 = vld [vmem:[%s1900 + $0x3c] sm:$0xf]
      %v1917 = vunpack.c.l.b16 %v1801
      %v1918 = vunpack.c.l.b16 %v1815
      %v1919 = vunpack.c.l.b16 %v1829
      %v1920 = vunpack.c.l.b16 %v1843
      %v1921 = vunpack.c.l.b16 %v1857
      %v1922 = vunpack.c.l.b16 %v1871
      %v1923 = vunpack.c.l.b16 %v1885
      %v1924 = vunpack.c.l.b16 %v1899
      %v1925 = vpack.c.b16 %v1918, %v1917
      %v1926 = vpack.c.b16 %v1920, %v1919
      %v1927 = vpack.c.b16 %v1922, %v1921
      %v1928 = vpack.c.b16 %v1924, %v1923
      %v1949 = vunpack.c.l.b16 %v1901
      %v1950 = vunpack.c.l.b16 %v1902
      %v1951 = vunpack.c.l.b16 %v1903
      %v1952 = vunpack.c.l.b16 %v1904
      %v1953 = vunpack.c.l.b16 %v1905
      %v1954 = vunpack.c.l.b16 %v1906
      %v1955 = vunpack.c.l.b16 %v1907
      %v1956 = vunpack.c.l.b16 %v1908
      %v1957 = vunpack.c.l.b16 %v1909
      %v1958 = vunpack.c.l.b16 %v1910
      %v1959 = vunpack.c.l.b16 %v1911
      %v1960 = vunpack.c.l.b16 %v1912
      %v1961 = vunpack.c.l.b16 %v1913
      %v1962 = vunpack.c.l.b16 %v1914
      %v1963 = vunpack.c.l.b16 %v1915
      %v1964 = vunpack.c.l.b16 %v1916
      %v1965 = vpack.c.b16 %v1950, %v1949
      %v1966 = vpack.c.b16 %v1952, %v1951
      %v1967 = vpack.c.b16 %v1954, %v1953
      %v1968 = vpack.c.b16 %v1956, %v1955
      %v1969 = vpack.c.b16 %v1958, %v1957
      %v1970 = vpack.c.b16 %v1960, %v1959
      %v1971 = vpack.c.b16 %v1962, %v1961
      %v1972 = vpack.c.b16 %v1964, %v1963
      %1981 = vmatprep.subr.bf16.mxu0 0
      %1982 = vmatpush1.bf16.msra.mxu0 %v1965
      %1983 = vmatprep.subr.bf16.mxu0 0
      %1984 = vmatpush1.bf16.msra.mxu0 %v1966
      %1985 = vmatprep.subr.bf16.mxu0 0
      %1986 = vmatpush1.bf16.msra.mxu0 %v1967
      %1987 = vmatprep.subr.bf16.mxu0 0
      %1988 = vmatpush1.bf16.msra.mxu0 %v1968
      %1989 = vmatprep.subr.bf16.mxu0 0
      %1990 = vmatpush1.bf16.msra.mxu0 %v1969
      %1991 = vmatprep.subr.bf16.mxu0 0
      %1992 = vmatpush1.bf16.msra.mxu0 %v1970
      %1993 = vmatprep.subr.bf16.mxu0 0
      %1994 = vmatpush1.bf16.msra.mxu0 %v1971
      %1995 = vmatprep.subr.bf16.mxu0 0
      %1996 = vmatpush1.bf16.msra.mxu0 %v1972
      %1997 = vmatprep.subr.bf16.mxu0 0
      %1998 = vmatpush1.bf16.msra.mxu0 0
      %1999 = vmatprep.subr.bf16.mxu0 0
      %2000 = vmatpush1.bf16.msra.mxu0 0
      %2001 = vmatprep.subr.bf16.mxu0 0
      %2002 = vmatpush1.bf16.msra.mxu0 0
      %2003 = vmatprep.subr.bf16.mxu0 0
      %2004 = vmatpush1.bf16.msra.mxu0 0
      %2005 = vmatprep.subr.bf16.mxu0 0
      %2006 = vmatpush1.bf16.msra.mxu0 0
      %2007 = vmatprep.subr.bf16.mxu0 0
      %2008 = vmatpush1.bf16.msra.mxu0 0
      %2009 = vmatprep.subr.bf16.mxu0 0
      %2010 = vmatpush1.bf16.msra.mxu0 0
      %2011 = vmatprep.subr.bf16.mxu0 0
      %2012 = vmatpush1.bf16.msra.mxu0 0
      %2013 = vmatprep.mubr.bf16.mxu0 0
      %2014 = vmatmul.mubr.bf16.gmra.mrb[0].mxu0 %v1925
      %v2015 = vpop.f32.mrb[0].mxu0
      %v2016 = vadd.f32 0.0, %v2015
      %v2017 = vpop.f32.mrb[0].mxu0
      %v2018 = vpop.f32.mrb[0].mxu0
      %v2019 = vadd.f32 0.0, %v2018
      %v2020 = vpop.f32.mrb[0].mxu0
      %2021 = vmatprep.mubr.bf16.mxu0 0
      %2022 = vmatmul.mubr.bf16.gmra.mrb[0].mxu0 %v1926
      %v2023 = vpop.f32.mrb[0].mxu0
      %v2024 = vadd.f32 0.0, %v2023
      %v2025 = vpop.f32.mrb[0].mxu0
      %v2026 = vpop.f32.mrb[0].mxu0
      %v2027 = vadd.f32 0.0, %v2026
      %v2028 = vpop.f32.mrb[0].mxu0
      %2029 = vmatprep.mubr.bf16.mxu0 0
      %2030 = vmatmul.mubr.bf16.gmra.mrb[0].mxu0 %v1927
      %v2031 = vpop.f32.mrb[0].mxu0
      %v2032 = vadd.f32 0.0, %v2031
      %v2033 = vpop.f32.mrb[0].mxu0
      %v2034 = vpop.f32.mrb[0].mxu0
      %v2035 = vadd.f32 0.0, %v2034
      %v2036 = vpop.f32.mrb[0].mxu0
      %2037 = vmatprep.mubr.bf16.mxu0 0
      %2038 = vmatmul.mubr.bf16.gmra.mrb[0].mxu0 %v1928
      %v2039 = vpop.f32.mrb[0].mxu0
      %v2040 = vadd.f32 0.0, %v2039
      %v2041 = vpop.f32.mrb[0].mxu0
      %v2042 = vpop.f32.mrb[0].mxu0
      %v2043 = vadd.f32 0.0, %v2042
      %v2044 = vpop.f32.mrb[0].mxu0
      %2045 = vdwg.mxu0
      %v2046 = vadd.f32 %v1764, %v2016
      %v2047 = vadd.f32 %v1765, %v2019
      %v2048 = vadd.f32 %v1766, %v2024
      %v2049 = vadd.f32 %v1767, %v2027
      %v2050 = vadd.f32 %v1768, %v2032
      %v2051 = vadd.f32 %v1769, %v2035
      %v2052 = vadd.f32 %v1770, %v2040
      %v2053 = vadd.f32 %v1771, %v2043
      %v2054 = vld [vmem:[%s1601] sm:$0xe]
      %v2055 = vld [vmem:[%s1601 + $0x8] sm:$0xe]
      %v2056 = vld [vmem:[%s1601 + $0x10] sm:$0xe]
      %v2057 = vld [vmem:[%s1601 + $0x18] sm:$0xe]
      %v2058 = vld [vmem:[%s1601 + $0x20] sm:$0xe]
      %v2059 = vld [vmem:[%s1601 + $0x28] sm:$0xe]
      %v2060 = vld [vmem:[%s1601 + $0x30] sm:$0xe]
      %v2061 = vld [vmem:[%s1601 + $0x38] sm:$0xe]
      %v2078 = vrot.slane %v2054, 5
      %v2079 = vrot.slane %v2078, 4
      %v2080 = vrot.slane %v1773, 5
      %v2081 = vsel %vm745, %v2079, %v2080
      %v2082 = vrot.slane %v2055, 5
      %v2083 = vrot.slane %v2082, 4
      %v2084 = vrot.slane %v1775, 5
      %v2085 = vsel %vm745, %v2083, %v2084
      %v2086 = vrot.slane %v2056, 5
      %v2087 = vrot.slane %v2086, 4
      %v2088 = vrot.slane %v1777, 5
      %v2089 = vsel %vm745, %v2087, %v2088
      %v2090 = vrot.slane %v2057, 5
      %v2091 = vrot.slane %v2090, 4
      %v2092 = vrot.slane %v1779, 5
      %v2093 = vsel %vm745, %v2091, %v2092
      %v2094 = vrot.slane %v2058, 5
      %v2095 = vrot.slane %v2094, 4
      %v2096 = vrot.slane %v1781, 5
      %v2097 = vsel %vm745, %v2095, %v2096
      %v2098 = vrot.slane %v2059, 5
      %v2099 = vrot.slane %v2098, 4
      %v2100 = vrot.slane %v1783, 5
      %v2101 = vsel %vm745, %v2099, %v2100
      %v2102 = vrot.slane %v2060, 5
      %v2103 = vrot.slane %v2102, 4
      %v2104 = vrot.slane %v1785, 5
      %v2105 = vsel %vm745, %v2103, %v2104
      %v2106 = vrot.slane %v2061, 5
      %v2107 = vrot.slane %v2106, 4
      %v2108 = vrot.slane %v1787, 5
      %v2109 = vsel %vm745, %v2107, %v2108
      %s2110 = scalar_lea.vmem %s1, 512
      %v2111 = vld [vmem:[%s2110] sm:$0xf]
      %v2112 = vld [vmem:[%s2110 + $0x4] sm:$0xf]
      %v2113 = vld [vmem:[%s2110 + $0x8] sm:$0xf]
      %v2114 = vld [vmem:[%s2110 + $0xc] sm:$0xf]
      %v2115 = vld [vmem:[%s2110 + $0x10] sm:$0xf]
      %v2116 = vld [vmem:[%s2110 + $0x14] sm:$0xf]
      %v2117 = vld [vmem:[%s2110 + $0x18] sm:$0xf]
      %v2118 = vld [vmem:[%s2110 + $0x1c] sm:$0xf]
      %v2119 = vld [vmem:[%s2110 + $0x20] sm:$0xf]
      %v2120 = vld [vmem:[%s2110 + $0x24] sm:$0xf]
      %v2121 = vld [vmem:[%s2110 + $0x28] sm:$0xf]
      %v2122 = vld [vmem:[%s2110 + $0x2c] sm:$0xf]
      %v2123 = vld [vmem:[%s2110 + $0x30] sm:$0xf]
      %v2124 = vld [vmem:[%s2110 + $0x34] sm:$0xf]
      %v2125 = vld [vmem:[%s2110 + $0x38] sm:$0xf]
      %v2126 = vld [vmem:[%s2110 + $0x3c] sm:$0xf]
      %v2127 = vunpack.c.l.b16 %v2081
      %v2128 = vunpack.c.l.b16 %v2085
      %v2129 = vunpack.c.l.b16 %v2089
      %v2130 = vunpack.c.l.b16 %v2093
      %v2131 = vunpack.c.l.b16 %v2097
      %v2132 = vunpack.c.l.b16 %v2101
      %v2133 = vunpack.c.l.b16 %v2105
      %v2134 = vunpack.c.l.b16 %v2109
      %v2135 = vpack.c.b16 %v2128, %v2127
      %v2136 = vpack.c.b16 %v2130, %v2129
      %v2137 = vpack.c.b16 %v2132, %v2131
      %v2138 = vpack.c.b16 %v2134, %v2133
      %v2159 = vunpack.c.l.b16 %v2111
      %v2160 = vunpack.c.l.b16 %v2112
      %v2161 = vunpack.c.l.b16 %v2113
      %v2162 = vunpack.c.l.b16 %v2114
      %v2163 = vunpack.c.l.b16 %v2115
      %v2164 = vunpack.c.l.b16 %v2116
      %v2165 = vunpack.c.l.b16 %v2117
      %v2166 = vunpack.c.l.b16 %v2118
      %v2167 = vunpack.c.l.b16 %v2119
      %v2168 = vunpack.c.l.b16 %v2120
      %v2169 = vunpack.c.l.b16 %v2121
      %v2170 = vunpack.c.l.b16 %v2122
      %v2171 = vunpack.c.l.b16 %v2123
      %v2172 = vunpack.c.l.b16 %v2124
      %v2173 = vunpack.c.l.b16 %v2125
      %v2174 = vunpack.c.l.b16 %v2126
      %v2175 = vpack.c.b16 %v2160, %v2159
      %v2176 = vpack.c.b16 %v2162, %v2161
      %v2177 = vpack.c.b16 %v2164, %v2163
      %v2178 = vpack.c.b16 %v2166, %v2165
      %v2179 = vpack.c.b16 %v2168, %v2167
      %v2180 = vpack.c.b16 %v2170, %v2169
      %v2181 = vpack.c.b16 %v2172, %v2171
      %v2182 = vpack.c.b16 %v2174, %v2173
      %2191 = vmatprep.subr.bf16.mxu0 0
      %2192 = vmatpush1.bf16.msra.mxu0 %v2175
      %2193 = vmatprep.subr.bf16.mxu0 0
      %2194 = vmatpush1.bf16.msra.mxu0 %v2176
      %2195 = vmatprep.subr.bf16.mxu0 0
      %2196 = vmatpush1.bf16.msra.mxu0 %v2177
      %2197 = vmatprep.subr.bf16.mxu0 0
      %2198 = vmatpush1.bf16.msra.mxu0 %v2178
      %2199 = vmatprep.subr.bf16.mxu0 0
      %2200 = vmatpush1.bf16.msra.mxu0 %v2179
      %2201 = vmatprep.subr.bf16.mxu0 0
      %2202 = vmatpush1.bf16.msra.mxu0 %v2180
      %2203 = vmatprep.subr.bf16.mxu0 0
      %2204 = vmatpush1.bf16.msra.mxu0 %v2181
      %2205 = vmatprep.subr.bf16.mxu0 0
      %2206 = vmatpush1.bf16.msra.mxu0 %v2182
      %2207 = vmatprep.subr.bf16.mxu0 0
      %2208 = vmatpush1.bf16.msra.mxu0 0
      %2209 = vmatprep.subr.bf16.mxu0 0
      %2210 = vmatpush1.bf16.msra.mxu0 0
      %2211 = vmatprep.subr.bf16.mxu0 0
      %2212 = vmatpush1.bf16.msra.mxu0 0
      %2213 = vmatprep.subr.bf16.mxu0 0
      %2214 = vmatpush1.bf16.msra.mxu0 0
      %2215 = vmatprep.subr.bf16.mxu0 0
      %2216 = vmatpush1.bf16.msra.mxu0 0
      %2217 = vmatprep.subr.bf16.mxu0 0
      %2218 = vmatpush1.bf16.msra.mxu0 0
      %2219 = vmatprep.subr.bf16.mxu0 0
      %2220 = vmatpush1.bf16.msra.mxu0 0
      %2221 = vmatprep.subr.bf16.mxu0 0
      %2222 = vmatpush1.bf16.msra.mxu0 0
      %2223 = vmatprep.mubr.bf16.mxu0 0
      %2224 = vmatmul.mubr.bf16.gmra.mrb[0].mxu0 %v2135
      %v2225 = vpop.f32.mrb[0].mxu0
      %v2226 = vadd.f32 0.0, %v2225
      %v2227 = vpop.f32.mrb[0].mxu0
      %v2228 = vpop.f32.mrb[0].mxu0
      %v2229 = vadd.f32 0.0, %v2228
      %v2230 = vpop.f32.mrb[0].mxu0
      %2231 = vmatprep.mubr.bf16.mxu0 0
      %2232 = vmatmul.mubr.bf16.gmra.mrb[0].mxu0 %v2136
      %v2233 = vpop.f32.mrb[0].mxu0
      %v2234 = vadd.f32 0.0, %v2233
      %v2235 = vpop.f32.mrb[0].mxu0
      %v2236 = vpop.f32.mrb[0].mxu0
      %v2237 = vadd.f32 0.0, %v2236
      %v2238 = vpop.f32.mrb[0].mxu0
      %2239 = vmatprep.mubr.bf16.mxu0 0
      %2240 = vmatmul.mubr.bf16.gmra.mrb[0].mxu0 %v2137
      %v2241 = vpop.f32.mrb[0].mxu0
      %v2242 = vadd.f32 0.0, %v2241
      %v2243 = vpop.f32.mrb[0].mxu0
      %v2244 = vpop.f32.mrb[0].mxu0
      %v2245 = vadd.f32 0.0, %v2244
      %v2246 = vpop.f32.mrb[0].mxu0
      %2247 = vmatprep.mubr.bf16.mxu0 0
      %2248 = vmatmul.mubr.bf16.gmra.mrb[0].mxu0 %v2138
      %v2249 = vpop.f32.mrb[0].mxu0
      %v2250 = vadd.f32 0.0, %v2249
      %v2251 = vpop.f32.mrb[0].mxu0
      %v2252 = vpop.f32.mrb[0].mxu0
      %v2253 = vadd.f32 0.0, %v2252
      %v2254 = vpop.f32.mrb[0].mxu0
      %2255 = vdwg.mxu0
      %v2256 = vadd.f32 %v2046, %v2226
      %v2257 = vadd.f32 %v2047, %v2229
      %v2258 = vadd.f32 %v2048, %v2234
      %v2259 = vadd.f32 %v2049, %v2237
      %v2260 = vadd.f32 %v2050, %v2242
      %v2261 = vadd.f32 %v2051, %v2245
      %v2262 = vadd.f32 %v2052, %v2250
      %v2263 = vadd.f32 %v2053, %v2253
      %v2264 = vld [vmem:[%s2] sm:$0x1]
      %v2266 = vlaneseq
      %v2267 = vshrl.u32 %v2266, 7
      %v2268 = vsub.s32 0, %v2267
      %v2269 = vrot.slane %v2264, %v2268
      %v2271 = vadd.f32 %v2256, %v2269
      %v2272 = vadd.f32 %v2257, %v2269
      %v2273 = vadd.f32 %v2258, %v2269
      %v2274 = vadd.f32 %v2259, %v2269
      %v2275 = vadd.f32 %v2260, %v2269
      %v2276 = vadd.f32 %v2261, %v2269
      %v2277 = vadd.f32 %v2262, %v2269
      %v2278 = vadd.f32 %v2263, %v2269
      %v2279 = vld [vmem:[%s272] sm:$0xf]
      %v2280 = vld [vmem:[%s272 + $0x4] sm:$0xf]
      %v2281 = vld [vmem:[%s272 + $0x8] sm:$0xf]
      %v2282 = vld [vmem:[%s272 + $0xc] sm:$0xf]
      %v2283 = vld [vmem:[%s272 + $0x10] sm:$0xf]
      %v2284 = vld [vmem:[%s272 + $0x14] sm:$0xf]
      %v2285 = vld [vmem:[%s272 + $0x18] sm:$0xf]
      %v2286 = vld [vmem:[%s272 + $0x1c] sm:$0xf]
      %v2287 = vld [vmem:[%s4] sm:$0x3]
      %v2296 = vunpack.c.l.b16 %v2279
      %v2297 = vunpack.c.l.b16 %v2280
      %v2298 = vunpack.c.l.b16 %v2281
      %v2299 = vunpack.c.l.b16 %v2282
      %v2300 = vunpack.c.l.b16 %v2283
      %v2301 = vunpack.c.l.b16 %v2284
      %v2302 = vunpack.c.l.b16 %v2285
      %v2303 = vunpack.c.l.b16 %v2286
      %v2304 = vpack.c.b16 %v2297, %v2296
      %v2305 = vpack.c.b16 %v2299, %v2298
      %v2306 = vpack.c.b16 %v2301, %v2300
      %v2307 = vpack.c.b16 %v2303, %v2302
      %vm2308 = vcmask 31744
      %v2310 = vsel %vm2308, %v2304, 0
      %v2313 = vsel %vm2308, %v2305, 0
      %v2316 = vsel %vm2308, %v2306, 0
      %v2319 = vsel %vm2308, %v2307, 0
      %vm2321 = vcmask 1041408
      %v2323 = vsel %vm2321, %v2287, 0
      %2325 = vmatprep.subr.bf16.mxu0 0
      %2326 = vmatpush1.bf16.msra.mxu0 %v2323
      %2327 = vmatprep.subr.bf16.mxu0 0
      %2328 = vmatpush1.bf16.msra.mxu0 0
      %2329 = vmatprep.subr.bf16.mxu0 0
      %2330 = vmatpush1.bf16.msra.mxu0 0
      %2331 = vmatprep.subr.bf16.mxu0 0
      %2332 = vmatpush1.bf16.msra.mxu0 0
      %2333 = vmatprep.subr.bf16.mxu0 0
      %2334 = vmatpush1.bf16.msra.mxu0 0
      %2335 = vmatprep.subr.bf16.mxu0 0
      %2336 = vmatpush1.bf16.msra.mxu0 0
      %2337 = vmatprep.subr.bf16.mxu0 0
      %2338 = vmatpush1.bf16.msra.mxu0 0
      %2339 = vmatprep.subr.bf16.mxu0 0
      %2340 = vmatpush1.bf16.msra.mxu0 0
      %2341 = vmatprep.subr.bf16.mxu0 0
      %2342 = vmatpush1.bf16.msra.mxu0 0
      %2343 = vmatprep.subr.bf16.mxu0 0
      %2344 = vmatpush1.bf16.msra.mxu0 0
      %2345 = vmatprep.subr.bf16.mxu0 0
      %2346 = vmatpush1.bf16.msra.mxu0 0
      %2347 = vmatprep.subr.bf16.mxu0 0
      %2348 = vmatpush1.bf16.msra.mxu0 0
      %2349 = vmatprep.subr.bf16.mxu0 0
      %2350 = vmatpush1.bf16.msra.mxu0 0
      %2351 = vmatprep.subr.bf16.mxu0 0
      %2352 = vmatpush1.bf16.msra.mxu0 0
      %2353 = vmatprep.subr.bf16.mxu0 0
      %2354 = vmatpush1.bf16.msra.mxu0 0
      %2355 = vmatprep.subr.bf16.mxu0 0
      %2356 = vmatpush1.bf16.msra.mxu0 0
      %2357 = vmatprep.mubr.bf16.mxu0 0
      %2358 = vmatmul.mubr.bf16.gmra.mrb[0].mxu0 %v2310
      %v2359 = vpop.f32.mrb[0].mxu0
      %v2360 = vadd.f32 0.0, %v2359
      %v2361 = vpop.f32.mrb[0].mxu0
      %v2362 = vpop.f32.mrb[0].mxu0
      %v2363 = vadd.f32 0.0, %v2362
      %v2364 = vpop.f32.mrb[0].mxu0
      %2365 = vmatprep.mubr.bf16.mxu0 0
      %2366 = vmatmul.mubr.bf16.gmra.mrb[0].mxu0 %v2313
      %v2367 = vpop.f32.mrb[0].mxu0
      %v2368 = vadd.f32 0.0, %v2367
      %v2369 = vpop.f32.mrb[0].mxu0
      %v2370 = vpop.f32.mrb[0].mxu0
      %v2371 = vadd.f32 0.0, %v2370
      %v2372 = vpop.f32.mrb[0].mxu0
      %2373 = vmatprep.mubr.bf16.mxu0 0
      %2374 = vmatmul.mubr.bf16.gmra.mrb[0].mxu0 %v2316
      %v2375 = vpop.f32.mrb[0].mxu0
      %v2376 = vadd.f32 0.0, %v2375
      %v2377 = vpop.f32.mrb[0].mxu0
      %v2378 = vpop.f32.mrb[0].mxu0
      %v2379 = vadd.f32 0.0, %v2378
      %v2380 = vpop.f32.mrb[0].mxu0
      %2381 = vmatprep.mubr.bf16.mxu0 0
      %2382 = vmatmul.mubr.bf16.gmra.mrb[0].mxu0 %v2319
      %v2383 = vpop.f32.mrb[0].mxu0
      %v2384 = vadd.f32 0.0, %v2383
      %v2385 = vpop.f32.mrb[0].mxu0
      %v2386 = vpop.f32.mrb[0].mxu0
      %v2387 = vadd.f32 0.0, %v2386
      %v2388 = vpop.f32.mrb[0].mxu0
      %2389 = vdwg.mxu0
      %v2390 = vadd.f32 %v2271, %v2360
      %v2391 = vadd.f32 %v2272, %v2363
      %v2392 = vadd.f32 %v2273, %v2368
      %v2393 = vadd.f32 %v2274, %v2371
      %v2394 = vadd.f32 %v2275, %v2376
      %v2395 = vadd.f32 %v2276, %v2379
      %v2396 = vadd.f32 %v2277, %v2384
      %v2397 = vadd.f32 %v2278, %v2387
      %v2398 = vmax.f32 %v2390, 0.0
      %v2399 = vmax.f32 %v2391, 0.0
      %v2400 = vmax.f32 %v2392, 0.0
      %v2401 = vmax.f32 %v2393, 0.0
      %v2402 = vmax.f32 %v2394, 0.0
      %v2403 = vmax.f32 %v2395, 0.0
      %v2404 = vmax.f32 %v2396, 0.0
      %v2405 = vmax.f32 %v2397, 0.0
      %v2406 = vpack.c.bf16 %v2398, %v2398
      %v2407 = vpack.c.bf16 %v2399, %v2399
      %v2408 = vpack.c.bf16 %v2400, %v2400
      %v2409 = vpack.c.bf16 %v2401, %v2401
      %v2410 = vpack.c.bf16 %v2402, %v2402
      %v2411 = vpack.c.bf16 %v2403, %v2403
      %v2412 = vpack.c.bf16 %v2404, %v2404
      %v2413 = vpack.c.bf16 %v2405, %v2405
      %2414 = vst [vmem:[%s282] sm:$0xf] %v2406
      %2415 = vst [vmem:[%s282 + $0x4] sm:$0xf] %v2407
      %2416 = vst [vmem:[%s282 + $0x8] sm:$0xf] %v2408
      %2417 = vst [vmem:[%s282 + $0xc] sm:$0xf] %v2409
      %2418 = vst [vmem:[%s282 + $0x10] sm:$0xf] %v2410
      %2419 = vst [vmem:[%s282 + $0x14] sm:$0xf] %v2411
      %2420 = vst [vmem:[%s282 + $0x18] sm:$0xf] %v2412
      %2421 = vst [vmem:[%s282 + $0x1c] sm:$0xf] %v2413
      %s2422 = smul.u32 8, %s21
      %p2423 = scmp.lt.s32.totalorder %s20, 1
      %s2424 = scalar_select %p2423, %s20, 1
      %p2425 = scmp.lt.s32.totalorder %s2422, 7
      %s2426 = scalar_select %p2425, %s2422, 7
      %s2427 = smul.addr %s2424, 8
      %s2428 = sadd.s32 %s2426, %s2427
      %s2429 = smul.addr %s2428, 4
      %s2430 = scalar_lea.vmem %s5, %s2429
      // Predicated region
      $region41: #{_forward_impl.3} parent=39 // pred_check
        %p2431 = pneg %p165
      $region42: #{_forward_impl.3} parent=39 // pred_check_branch
        %2433 = sbr.rel (%p2431) target = $region44
      $region43: #{_forward_impl.3} parent=39 // pred_region
        %s2434 = smul.u32 8, %s21
      $region44: #{_forward_impl.3} parent=39 // pred_fallthru
        _
    $region40: #{_forward_impl.3} parent=5 // pred_fallthru
      _
    %p2435 = scmp.le.s32.totalorder 2, %s11
    // Predicated region
    $region45: #{_forward_impl.3} parent=5 // pred_check
      %p2436 = pneg %p2435
    $region46: #{_forward_impl.3} parent=5 // pred_check_branch
      %2438 = sbr.rel (%p2436) target = $region48
    $region47: #{_forward_impl.3} parent=5 // pred_region
      %s2439 = ssub.s32 %s11, 2
      // Predicated region
      $region49: #{_forward_impl.3} parent=47 // pred_check
        %p2440 = pneg %p171
      $region50: #{_forward_impl.3} parent=47 // pred_check_branch
        %2442 = sbr.rel (%p2440) target = $region52
      $region51: #{_forward_impl.3} parent=47 // pred_region
        %s2443 = smul.u32 8, %s23
        %p2444 = scmp.lt.s32.totalorder %s22, 1
        %s2445 = scalar_select %p2444, %s22, 1
        %p2446 = scmp.lt.s32.totalorder %s2443, 7
        %s2447 = scalar_select %p2446, %s2443, 7
        %s2448 = smul.addr %s2445, 8
        %s2449 = sadd.s32 %s2447, %s2448
        %s2450 = smul.addr %s2449, 4
        %s2451 = scalar_lea.vmem %s5, %s2450
      $region52: #{_forward_impl.3} parent=47 // pred_fallthru
        _
    $region48: #{_forward_impl.3} parent=5 // pred_fallthru
      _
  $region6: #{_forward_impl.3} parent=0 // loop_footer
    %s15 = sadd.s32 1, %s11
  $region7: #{_forward_impl.3} parent=0 // loop_footer_branch
    %10 = sbr.rel target = $region3
  $region8: #{_forward_impl.3} parent=0 // loop_exit
    _

</llo_original>
